<compile_context>
chip_gen: v6e
topology: v6e:2x2x1
jax: 0.10.0
libtpu: 0.0.40
codegen_flags: <defaults>
</compile_context>

<pallas_src>
from functools import partial

import jax
import jax.numpy as jnp
from jax import lax
from jax.experimental import pallas as pl
from jax.experimental.pallas import tpu as pltpu


# -----------------------------------------------------------------------------
# Pallas kernel: fused embedding + single-layer GRU (final hidden) + Linear head.
# PyTorch recurrence (gate order r, z, n):
#   r = sigmoid(x W_ir + b_ir + h W_hr + b_hr)
#   z = sigmoid(x W_iz + b_iz + h W_hz + b_hz)
#   n = tanh  (x W_in + b_in + r * (h W_hn + b_hn))
#   h = (1 - z) * n + z * h            (computed as n + z*(h - n))
# then logits = h_T @ W_fc + b_fc.
# -----------------------------------------------------------------------------
def gru_classifier_kernel(tok_ref,     # (T*Bp, 1) i32  time-major flattened token ids
                          w_ei_ref,    # (Vp, 3*Hp) f32 emb_table @ W_i + b_i (fused)
                          w_h_ref,     # (Hp, 3*Hp) f32 fused hidden weights [r|z|n]
                          b_hn_ref,    # (1, Hp)    f32 b_hn (must stay inside r*(...))
                          w_fc_ref,    # (Hp, Op)   f32 padded classifier weights
                          b_fc_ref,    # (1, Op)    f32 padded classifier bias
                          out_ref,     # (Bp, Op)   f32 lane-dense logits (padded)
                          xproj_ref):  # scratch VMEM (T*Bp, 3*Hp)
    TBp = tok_ref.shape[0]
    Vp = w_ei_ref.shape[0]
    Hp = w_h_ref.shape[0]
    Bp = out_ref.shape[0]
    T = TBp // Bp

    # ---- Fused embedding gather + input projection (+ all additive input biases). --
    # one_hot(token) @ (emb_table @ W_i + b_i) == emb[token] @ W_i + b_i, computed for
    # every (t, b) row in ONE MXU dot.  Padded batch rows carry token 0 (padding_idx,
    # zero embedding row -> xproj = b_i); they are sliced away in the wrapper and the
    # gate math on them is bounded, so they are harmless.
    tok = jnp.broadcast_to(tok_ref[...], (TBp, Vp))                  # lane broadcast
    vocab_iota = lax.broadcasted_iota(jnp.int32, (TBp, Vp), 1)
    one_hot = jnp.where(tok == vocab_iota, 1.0, 0.0).astype(jnp.float32)
    xproj_ref[...] = jnp.dot(one_hot, w_ei_ref[...],
                             preferred_element_type=jnp.float32)     # (T*Bp, 3*Hp)

    # ---- Recurrence: exactly one fused MXU dot per step on the critical path. ----
    b_hn = jnp.broadcast_to(b_hn_ref[...], (Bp, Hp))                 # hoisted broadcast

    def step(t, h):
        row0 = pl.multiple_of(t * Bp, 8)                             # sublane-aligned
        xp = xproj_ref[pl.ds(row0, Bp), :]                           # (Bp, 3*Hp)
        # w_h re-read from VMEM each step (3 vld/cycle hides it) instead of holding
        # 48 f32 vregs live across the fully unrolled loop -> no spill on the chain.
        hp = jnp.dot(h, w_h_ref[...], preferred_element_type=jnp.float32)
        # Static 128-lane-aligned gate slices: no cross-lane shuffles, no masking.
        r = jax.nn.sigmoid(xp[:, 0 * Hp:1 * Hp] + hp[:, 0 * Hp:1 * Hp])
        z = jax.nn.sigmoid(xp[:, 1 * Hp:2 * Hp] + hp[:, 1 * Hp:2 * Hp])
        n = jnp.tanh(xp[:, 2 * Hp:3 * Hp] + r * (hp[:, 2 * Hp:3 * Hp] + b_hn))
        # Padding lanes (H..Hp) of h stay exactly 0: xp/hp/b_hn padding is 0 => n pad
        # is 0, and h pad starts at 0, so n + z*(h - n) keeps it 0.
        return n + z * (h - n)            # == (1 - z) * n + z * h, one fewer VPU op

    h0 = jnp.zeros((Bp, Hp), dtype=jnp.float32)
    # T is small & static -> full unroll (LLO visibility); use unroll=4..8 if T grows.
    h_final = lax.fori_loop(0, T, step, h0, unroll=True)
    # TODO(synk): on v5e, stage w_h once via pltpu.matmul_push_rhs and use
    # matmul_acc_lhs/matmul_pop per step to take the weight push off the serial chain.

    # ---- Lane-dense classifier head (Op = 128 -> single unmasked vst). ----
    out_ref[...] = (jnp.dot(h_final, w_fc_ref[...],
                            preferred_element_type=jnp.float32)
                    + b_fc_ref[...]).astype(out_ref.dtype)


# -----------------------------------------------------------------------------
# One-time weight re-packing (param-load time, NOT per forward call).
# -----------------------------------------------------------------------------
def pack_params(params, hp=128, op=128):
    f32 = jnp.float32
    emb = params["embedding"].astype(f32)                 # (V, E)
    w_ih, w_hh = params["w_ih"], params["w_hh"]           # (3, E, H), (3, H, H) [r,z,n]
    b_ih, b_hh = params["b_ih"], params["b_hh"]           # (3, 1, H), (3, 1, H)
    w_fc, b_fc = params["w_fc"], params["b_fc"]           # (H, O),    (1, O)
    V, _E = emb.shape
    H = w_hh.shape[1]
    O = w_fc.shape[1]
    assert H <= hp and O <= op

    w_i = jnp.zeros((emb.shape[1], 3 * hp), f32)
    w_h = jnp.zeros((hp, 3 * hp), f32)
    b_i = jnp.zeros((1, 3 * hp), f32)
    for g in range(3):                                    # gate order: r, z, n
        w_i = w_i.at[:, g * hp:g * hp + H].set(w_ih[g].astype(f32))
        w_h = w_h.at[:H, g * hp:g * hp + H].set(w_hh[g].astype(f32))
    # b_hr/b_hz are time-invariant additive terms of the sigmoid args -> fold into the
    # input-side bias; b_hn must NOT be folded (it is multiplied by r in the kernel).
    b_i = b_i.at[:, 0 * hp:0 * hp + H].set((b_ih[0] + b_hh[0]).astype(f32))
    b_i = b_i.at[:, 1 * hp:1 * hp + H].set((b_ih[1] + b_hh[1]).astype(f32))
    b_i = b_i.at[:, 2 * hp:2 * hp + H].set(b_ih[2].astype(f32))

    # Fuse embedding lookup + input projection: one_hot(tok) @ w_ei == emb[tok]@W_i+b_i.
    vp = 128 * pl.cdiv(V, 128)
    w_ei = jnp.zeros((vp, 3 * hp), f32).at[:V].set(emb @ w_i + b_i)

    b_hn = jnp.zeros((1, hp), f32).at[:, :H].set(b_hh[2].astype(f32))
    w_fc_p = jnp.zeros((hp, op), f32).at[:H, :O].set(w_fc.astype(f32))
    b_fc_p = jnp.zeros((1, op), f32).at[:, :O].set(b_fc.astype(f32))
    # NOTE(v6e/v7x): w_ei / w_h / w_fc_p can be cast to bfloat16 here (keep
    # preferred_element_type=f32 in the kernel) to halve vreg/VMEM pressure and weight
    # streaming; kept f32 so the tight f32 reference check passes on all generations.
    return dict(w_ei=w_ei, w_h=w_h, b_hn=b_hn, w_fc=w_fc_p, b_fc=b_fc_p)


# -----------------------------------------------------------------------------
# Forward wrapper: token layout prep + single fused pallas_call (jitted).
# -----------------------------------------------------------------------------
@partial(jax.jit, static_argnames=("output_dim",))
def banned_word_classifier_forward(x_tokens, packed, *, output_dim):
    B, T = x_tokens.shape
    Hp = packed["w_h"].shape[0]
    Op = packed["w_fc"].shape[1]
    Bp = 8 * pl.cdiv(B, 8)                 # pad batch to a full f32 sublane tile

    # Time-major, batch-padded, flattened token ids; pad rows use padding_idx 0.
    tok_tm = jnp.zeros((T, Bp), jnp.int32).at[:, :B].set(x_tokens.T.astype(jnp.int32))
    tok_flat = tok_tm.reshape(T * Bp, 1)

    vmem = pltpu.MemorySpace.VMEM
    out_padded = pl.pallas_call(
        gru_classifier_kernel,
        out_shape=jax.ShapeDtypeStruct((Bp, Op), jnp.float32),
        in_specs=[pl.BlockSpec(memory_space=vmem)] * 6,
        out_specs=pl.BlockSpec(memory_space=vmem),
        scratch_shapes=[pltpu.VMEM((T * Bp, 3 * Hp), jnp.float32)],
    )(tok_flat, packed["w_ei"], packed["w_h"], packed["b_hn"],
      packed["w_fc"], packed["b_fc"])
    # TODO(synk): for long sequences, tile T with a grid ("arbitrary") + persistent h
    # scratch instead of a whole-(T*Bp,3*Hp) xproj; for large B on v7x, add a batch
    # grid (tiles of 8) with dimension_semantics=("parallel",) to use both TensorCores.
    return out_padded[:B, :output_dim]


# -----------------------------------------------------------------------------
# Pure-JAX reference (for correctness check only)
# -----------------------------------------------------------------------------
def reference_forward(x_tokens, params):
    emb = jnp.take(params["embedding"], x_tokens, axis=0)      # (B, T, E)
    B, T, _E = emb.shape
    H = params["w_hh"].shape[1]
    h = jnp.zeros((B, H), jnp.float32)
    for t in range(T):
        x_t = emb[:, t, :]
        r = jax.nn.sigmoid(x_t @ params["w_ih"][0] + params["b_ih"][0]
                           + h @ params["w_hh"][0] + params["b_hh"][0])
        z = jax.nn.sigmoid(x_t @ params["w_ih"][1] + params["b_ih"][1]
                           + h @ params["w_hh"][1] + params["b_hh"][1])
        n = jnp.tanh(x_t @ params["w_ih"][2] + params["b_ih"][2]
                     + r * (h @ params["w_hh"][2] + params["b_hh"][2]))
        h = (1.0 - z) * n + z * h
    return h @ params["w_fc"] + params["b_fc"]


def init_params(key, vocab_size, embedding_dim=32, hidden_dim=64, output_dim=6):
    ks = jax.random.split(key, 7)
    k_gru = 1.0 / jnp.sqrt(hidden_dim)      # PyTorch GRU init bound
    k_fc = 1.0 / jnp.sqrt(hidden_dim)       # PyTorch Linear init bound (fan_in=H)

    emb = jax.random.normal(ks[0], (vocab_size, embedding_dim), jnp.float32)
    emb = emb.at[0].set(0.0)                # padding_idx=0

    w_ih = jax.random.uniform(ks[1], (3, embedding_dim, hidden_dim),
                              jnp.float32, -k_gru, k_gru)
    w_hh = jax.random.uniform(ks[2], (3, hidden_dim, hidden_dim),
                              jnp.float32, -k_gru, k_gru)
    b_ih = jax.random.uniform(ks[3], (3, 1, hidden_dim),
                              jnp.float32, -k_gru, k_gru)
    b_hh = jax.random.uniform(ks[4], (3, 1, hidden_dim),
                              jnp.float32, -k_gru, k_gru)
    w_fc = jax.random.uniform(ks[5], (hidden_dim, output_dim),
                              jnp.float32, -k_fc, k_fc)
    b_fc = jax.random.uniform(ks[6], (1, output_dim),
                              jnp.float32, -k_fc, k_fc)
    return dict(embedding=emb, w_ih=w_ih, w_hh=w_hh,
                b_ih=b_ih, b_hh=b_hh, w_fc=w_fc, b_fc=b_fc)


if __name__ == "__main__":
    VOCAB, E, H, O = 128, 32, 64, 6
    B, T = 2, 8

    key = jax.random.PRNGKey(0)
    k_params, k_tokens = jax.random.split(key)
    params = init_params(k_params, VOCAB, E, H, O)
    # Token ids in [0, VOCAB); 0 is the padding row (zeroed in the table).
    x_tokens = jax.random.randint(k_tokens, (B, T), 0, VOCAB, dtype=jnp.int32)

    packed = pack_params(params)                       # one-time, off the call path
    packed = jax.block_until_ready(packed)

    logits = banned_word_classifier_forward(x_tokens, packed, output_dim=O)
    logits = jax.block_until_ready(logits)

    ref = reference_forward(x_tokens, params)
    assert logits.shape == (B, O), logits.shape
    assert jnp.allclose(logits, ref, atol=1e-4, rtol=1e-4), (logits, ref)
    print("KERNEL_OK")
</pallas_src>

<mosaic_0001>
module attributes {stable_mosaic.version = 11 : i64} {
  func.func @gru_classifier_kernel(%arg0: memref<64x1xi32, #tpu.memory_space<vmem>>, %arg1: memref<128x384xf32, #tpu.memory_space<vmem>>, %arg2: memref<128x384xf32, #tpu.memory_space<vmem>>, %arg3: memref<1x128xf32, #tpu.memory_space<vmem>>, %arg4: memref<128x128xf32, #tpu.memory_space<vmem>>, %arg5: memref<1x128xf32, #tpu.memory_space<vmem>>, %arg6: memref<8x128xf32, #tpu.memory_space<vmem>>, %arg7: memref<64x384xf32, #tpu.memory_space<vmem>>) attributes {dimension_semantics = [], scalar_prefetch = 0 : i64, scratch_operands = 1 : i64, tpu.core_type = #tpu.core_type<tc>} {
    %c0 = arith.constant 0 : index
    %c0_0 = arith.constant 0 : index
    %0 = vector.load %arg0[%c0, %c0_0] : memref<64x1xi32, #tpu.memory_space<vmem>>, vector<64x1xi32>
    %1 = vector.shape_cast %0 : vector<64x1xi32> to vector<64x1xi32>
    %2 = vector.broadcast %1 : vector<64x1xi32> to vector<64x128xi32>
    %3 = tpu.iota {dimensions = array<i32: 1>} : vector<64x128xi32>
    %4 = arith.cmpi eq, %2, %3 : vector<64x128xi32>
    %cst = arith.constant 1.000000e+00 : f32
    %cst_1 = arith.constant 0.000000e+00 : f32
    %5 = vector.broadcast %cst : f32 to vector<64x128xf32>
    %6 = vector.broadcast %cst_1 : f32 to vector<64x128xf32>
    %7 = arith.select %4, %5, %6 : vector<64x128xi1>, vector<64x128xf32>
    %c0_2 = arith.constant 0 : index
    %c0_3 = arith.constant 0 : index
    %8 = vector.load %arg1[%c0_2, %c0_3] : memref<128x384xf32, #tpu.memory_space<vmem>>, vector<128x384xf32>
    %cst_4 = arith.constant dense<0.000000e+00> : vector<64x384xf32>
    %9 = tpu.matmul %7, %8, %cst_4 {dimension_numbers = #tpu.dot_dimension_numbers<[1], [0], [0], [1], [0, 0, 1, 1], [], []>} : vector<64x128xf32>, vector<128x384xf32>, vector<64x384xf32> -> vector<64x384xf32>
    %c0_5 = arith.constant 0 : index
    %c0_6 = arith.constant 0 : index
    %10 = vector.load %arg7[%c0_5, %c0_6] : memref<64x384xf32, #tpu.memory_space<vmem>>, vector<64x384xf32>
    tpu.vector_store %arg7[%c0_5, %c0_6], %9 {strides = array<i32>} : memref<64x384xf32, #tpu.memory_space<vmem>>, vector<64x384xf32>,
    %c0_7 = arith.constant 0 : index
    %c0_8 = arith.constant 0 : index
    %11 = vector.load %arg3[%c0_7, %c0_8] : memref<1x128xf32, #tpu.memory_space<vmem>>, vector<1x128xf32>
    %12 = vector.shape_cast %11 : vector<1x128xf32> to vector<1x128xf32>
    %13 = vector.broadcast %12 : vector<1x128xf32> to vector<8x128xf32>
    %cst_9 = arith.constant 0.000000e+00 : f32
    %14 = vector.broadcast %cst_9 : f32 to vector<8x128xf32>
    %c0_i32 = arith.constant 0 : i32
    %c8_i32 = arith.constant 8 : i32
    %15 = arith.muli %c0_i32, %c8_i32 : i32
    %16 = tpu.assume_multiple %15, 8 : i32
    %17 = arith.index_cast %16 : i32 to index
    %c0_10 = arith.constant 0 : index
    %18 = vector.load %arg7[%17, %c0_10] : memref<64x384xf32, #tpu.memory_space<vmem>>, vector<8x384xf32>
    %c0_11 = arith.constant 0 : index
    %c0_12 = arith.constant 0 : index
    %19 = vector.load %arg2[%c0_11, %c0_12] : memref<128x384xf32, #tpu.memory_space<vmem>>, vector<128x384xf32>
    %cst_13 = arith.constant dense<0.000000e+00> : vector<8x384xf32>
    %20 = tpu.matmul %14, %19, %cst_13 {dimension_numbers = #tpu.dot_dimension_numbers<[1], [0], [0], [1], [0, 0, 1, 1], [], []>} : vector<8x128xf32>, vector<128x384xf32>, vector<8x384xf32> -> vector<8x384xf32>
    %21 = vector.extract_strided_slice %18 {offsets = [0, 0], sizes = [8, 128], strides = [1, 1]} : vector<8x384xf32> to vector<8x128xf32>
    %22 = vector.extract_strided_slice %20 {offsets = [0, 0], sizes = [8, 128], strides = [1, 1]} : vector<8x384xf32> to vector<8x128xf32>
    %23 = arith.addf %21, %22 : vector<8x128xf32>
    %24 = arith.negf %23 : vector<8x128xf32>
    %25 = math.exp %24 : vector<8x128xf32>
    %cst_14 = arith.constant 1.000000e+00 : f32
    %26 = vector.broadcast %cst_14 : f32 to vector<8x128xf32>
    %27 = arith.addf %26, %25 : vector<8x128xf32>
    %28 = arith.divf %26, %27 : vector<8x128xf32>
    %29 = vector.extract_strided_slice %18 {offsets = [0, 128], sizes = [8, 128], strides = [1, 1]} : vector<8x384xf32> to vector<8x128xf32>
    %30 = vector.extract_strided_slice %20 {offsets = [0, 128], sizes = [8, 128], strides = [1, 1]} : vector<8x384xf32> to vector<8x128xf32>
    %31 = arith.addf %29, %30 : vector<8x128xf32>
    %32 = arith.negf %31 : vector<8x128xf32>
    %33 = math.exp %32 : vector<8x128xf32>
    %cst_15 = arith.constant 1.000000e+00 : f32
    %34 = vector.broadcast %cst_15 : f32 to vector<8x128xf32>
    %35 = arith.addf %34, %33 : vector<8x128xf32>
    %36 = arith.divf %34, %35 : vector<8x128xf32>
    %37 = vector.extract_strided_slice %18 {offsets = [0, 256], sizes = [8, 128], strides = [1, 1]} : vector<8x384xf32> to vector<8x128xf32>
    %38 = vector.extract_strided_slice %20 {offsets = [0, 256], sizes = [8, 128], strides = [1, 1]} : vector<8x384xf32> to vector<8x128xf32>
    %39 = arith.addf %38, %13 : vector<8x128xf32>
    %40 = arith.mulf %28, %39 : vector<8x128xf32>
    %41 = arith.addf %37, %40 : vector<8x128xf32>
    %42 = math.tanh %41 : vector<8x128xf32>
    %43 = arith.subf %14, %42 : vector<8x128xf32>
    %44 = arith.mulf %36, %43 : vector<8x128xf32>
    %45 = arith.addf %42, %44 : vector<8x128xf32>
    %c1_i32 = arith.constant 1 : i32
    %c8_i32_16 = arith.constant 8 : i32
    %46 = arith.muli %c1_i32, %c8_i32_16 : i32
    %47 = tpu.assume_multiple %46, 8 : i32
    %48 = arith.index_cast %47 : i32 to index
    %c0_17 = arith.constant 0 : index
    %49 = vector.load %arg7[%48, %c0_17] : memref<64x384xf32, #tpu.memory_space<vmem>>, vector<8x384xf32>
    %c0_18 = arith.constant 0 : index
    %c0_19 = arith.constant 0 : index
    %50 = vector.load %arg2[%c0_18, %c0_19] : memref<128x384xf32, #tpu.memory_space<vmem>>, vector<128x384xf32>
    %cst_20 = arith.constant dense<0.000000e+00> : vector<8x384xf32>
    %51 = tpu.matmul %45, %50, %cst_20 {dimension_numbers = #tpu.dot_dimension_numbers<[1], [0], [0], [1], [0, 0, 1, 1], [], []>} : vector<8x128xf32>, vector<128x384xf32>, vector<8x384xf32> -> vector<8x384xf32>
    %52 = vector.extract_strided_slice %49 {offsets = [0, 0], sizes = [8, 128], strides = [1, 1]} : vector<8x384xf32> to vector<8x128xf32>
    %53 = vector.extract_strided_slice %51 {offsets = [0, 0], sizes = [8, 128], strides = [1, 1]} : vector<8x384xf32> to vector<8x128xf32>
    %54 = arith.addf %52, %53 : vector<8x128xf32>
    %55 = arith.negf %54 : vector<8x128xf32>
    %56 = math.exp %55 : vector<8x128xf32>
    %cst_21 = arith.constant 1.000000e+00 : f32
    %57 = vector.broadcast %cst_21 : f32 to vector<8x128xf32>
    %58 = arith.addf %57, %56 : vector<8x128xf32>
    %59 = arith.divf %57, %58 : vector<8x128xf32>
    %60 = vector.extract_strided_slice %49 {offsets = [0, 128], sizes = [8, 128], strides = [1, 1]} : vector<8x384xf32> to vector<8x128xf32>
    %61 = vector.extract_strided_slice %51 {offsets = [0, 128], sizes = [8, 128], strides = [1, 1]} : vector<8x384xf32> to vector<8x128xf32>
    %62 = arith.addf %60, %61 : vector<8x128xf32>
    %63 = arith.negf %62 : vector<8x128xf32>
    %64 = math.exp %63 : vector<8x128xf32>
    %cst_22 = arith.constant 1.000000e+00 : f32
    %65 = vector.broadcast %cst_22 : f32 to vector<8x128xf32>
    %66 = arith.addf %65, %64 : vector<8x128xf32>
    %67 = arith.divf %65, %66 : vector<8x128xf32>
    %68 = vector.extract_strided_slice %49 {offsets = [0, 256], sizes = [8, 128], strides = [1, 1]} : vector<8x384xf32> to vector<8x128xf32>
    %69 = vector.extract_strided_slice %51 {offsets = [0, 256], sizes = [8, 128], strides = [1, 1]} : vector<8x384xf32> to vector<8x128xf32>
    %70 = arith.addf %69, %13 : vector<8x128xf32>
    %71 = arith.mulf %59, %70 : vector<8x128xf32>
    %72 = arith.addf %68, %71 : vector<8x128xf32>
    %73 = math.tanh %72 : vector<8x128xf32>
    %74 = arith.subf %45, %73 : vector<8x128xf32>
    %75 = arith.mulf %67, %74 : vector<8x128xf32>
    %76 = arith.addf %73, %75 : vector<8x128xf32>
    %c2_i32 = arith.constant 2 : i32
    %c8_i32_23 = arith.constant 8 : i32
    %77 = arith.muli %c2_i32, %c8_i32_23 : i32
    %78 = tpu.assume_multiple %77, 8 : i32
    %79 = arith.index_cast %78 : i32 to index
    %c0_24 = arith.constant 0 : index
    %80 = vector.load %arg7[%79, %c0_24] : memref<64x384xf32, #tpu.memory_space<vmem>>, vector<8x384xf32>
    %c0_25 = arith.constant 0 : index
    %c0_26 = arith.constant 0 : index
    %81 = vector.load %arg2[%c0_25, %c0_26] : memref<128x384xf32, #tpu.memory_space<vmem>>, vector<128x384xf32>
    %cst_27 = arith.constant dense<0.000000e+00> : vector<8x384xf32>
    %82 = tpu.matmul %76, %81, %cst_27 {dimension_numbers = #tpu.dot_dimension_numbers<[1], [0], [0], [1], [0, 0, 1, 1], [], []>} : vector<8x128xf32>, vector<128x384xf32>, vector<8x384xf32> -> vector<8x384xf32>
    %83 = vector.extract_strided_slice %80 {offsets = [0, 0], sizes = [8, 128], strides = [1, 1]} : vector<8x384xf32> to vector<8x128xf32>
    %84 = vector.extract_strided_slice %82 {offsets = [0, 0], sizes = [8, 128], strides = [1, 1]} : vector<8x384xf32> to vector<8x128xf32>
    %85 = arith.addf %83, %84 : vector<8x128xf32>
    %86 = arith.negf %85 : vector<8x128xf32>
    %87 = math.exp %86 : vector<8x128xf32>
    %cst_28 = arith.constant 1.000000e+00 : f32
    %88 = vector.broadcast %cst_28 : f32 to vector<8x128xf32>
    %89 = arith.addf %88, %87 : vector<8x128xf32>
    %90 = arith.divf %88, %89 : vector<8x128xf32>
    %91 = vector.extract_strided_slice %80 {offsets = [0, 128], sizes = [8, 128], strides = [1, 1]} : vector<8x384xf32> to vector<8x128xf32>
    %92 = vector.extract_strided_slice %82 {offsets = [0, 128], sizes = [8, 128], strides = [1, 1]} : vector<8x384xf32> to vector<8x128xf32>
    %93 = arith.addf %91, %92 : vector<8x128xf32>
    %94 = arith.negf %93 : vector<8x128xf32>
    %95 = math.exp %94 : vector<8x128xf32>
    %cst_29 = arith.constant 1.000000e+00 : f32
    %96 = vector.broadcast %cst_29 : f32 to vector<8x128xf32>
    %97 = arith.addf %96, %95 : vector<8x128xf32>
    %98 = arith.divf %96, %97 : vector<8x128xf32>
    %99 = vector.extract_strided_slice %80 {offsets = [0, 256], sizes = [8, 128], strides = [1, 1]} : vector<8x384xf32> to vector<8x128xf32>
    %100 = vector.extract_strided_slice %82 {offsets = [0, 256], sizes = [8, 128], strides = [1, 1]} : vector<8x384xf32> to vector<8x128xf32>
    %101 = arith.addf %100, %13 : vector<8x128xf32>
    %102 = arith.mulf %90, %101 : vector<8x128xf32>
    %103 = arith.addf %99, %102 : vector<8x128xf32>
    %104 = math.tanh %103 : vector<8x128xf32>
    %105 = arith.subf %76, %104 : vector<8x128xf32>
    %106 = arith.mulf %98, %105 : vector<8x128xf32>
    %107 = arith.addf %104, %106 : vector<8x128xf32>
    %c3_i32 = arith.constant 3 : i32
    %c8_i32_30 = arith.constant 8 : i32
    %108 = arith.muli %c3_i32, %c8_i32_30 : i32
    %109 = tpu.assume_multiple %108, 8 : i32
    %110 = arith.index_cast %109 : i32 to index
    %c0_31 = arith.constant 0 : index
    %111 = vector.load %arg7[%110, %c0_31] : memref<64x384xf32, #tpu.memory_space<vmem>>, vector<8x384xf32>
    %c0_32 = arith.constant 0 : index
    %c0_33 = arith.constant 0 : index
    %112 = vector.load %arg2[%c0_32, %c0_33] : memref<128x384xf32, #tpu.memory_space<vmem>>, vector<128x384xf32>
    %cst_34 = arith.constant dense<0.000000e+00> : vector<8x384xf32>
    %113 = tpu.matmul %107, %112, %cst_34 {dimension_numbers = #tpu.dot_dimension_numbers<[1], [0], [0], [1], [0, 0, 1, 1], [], []>} : vector<8x128xf32>, vector<128x384xf32>, vector<8x384xf32> -> vector<8x384xf32>
    %114 = vector.extract_strided_slice %111 {offsets = [0, 0], sizes = [8, 128], strides = [1, 1]} : vector<8x384xf32> to vector<8x128xf32>
    %115 = vector.extract_strided_slice %113 {offsets = [0, 0], sizes = [8, 128], strides = [1, 1]} : vector<8x384xf32> to vector<8x128xf32>
    %116 = arith.addf %114, %115 : vector<8x128xf32>
    %117 = arith.negf %116 : vector<8x128xf32>
    %118 = math.exp %117 : vector<8x128xf32>
    %cst_35 = arith.constant 1.000000e+00 : f32
    %119 = vector.broadcast %cst_35 : f32 to vector<8x128xf32>
    %120 = arith.addf %119, %118 : vector<8x128xf32>
    %121 = arith.divf %119, %120 : vector<8x128xf32>
    %122 = vector.extract_strided_slice %111 {offsets = [0, 128], sizes = [8, 128], strides = [1, 1]} : vector<8x384xf32> to vector<8x128xf32>
    %123 = vector.extract_strided_slice %113 {offsets = [0, 128], sizes = [8, 128], strides = [1, 1]} : vector<8x384xf32> to vector<8x128xf32>
    %124 = arith.addf %122, %123 : vector<8x128xf32>
    %125 = arith.negf %124 : vector<8x128xf32>
    %126 = math.exp %125 : vector<8x128xf32>
    %cst_36 = arith.constant 1.000000e+00 : f32
    %127 = vector.broadcast %cst_36 : f32 to vector<8x128xf32>
    %128 = arith.addf %127, %126 : vector<8x128xf32>
    %129 = arith.divf %127, %128 : vector<8x128xf32>
    %130 = vector.extract_strided_slice %111 {offsets = [0, 256], sizes = [8, 128], strides = [1, 1]} : vector<8x384xf32> to vector<8x128xf32>
    %131 = vector.extract_strided_slice %113 {offsets = [0, 256], sizes = [8, 128], strides = [1, 1]} : vector<8x384xf32> to vector<8x128xf32>
    %132 = arith.addf %131, %13 : vector<8x128xf32>
    %133 = arith.mulf %121, %132 : vector<8x128xf32>
    %134 = arith.addf %130, %133 : vector<8x128xf32>
    %135 = math.tanh %134 : vector<8x128xf32>
    %136 = arith.subf %107, %135 : vector<8x128xf32>
    %137 = arith.mulf %129, %136 : vector<8x128xf32>
    %138 = arith.addf %135, %137 : vector<8x128xf32>
    %c4_i32 = arith.constant 4 : i32
    %c8_i32_37 = arith.constant 8 : i32
    %139 = arith.muli %c4_i32, %c8_i32_37 : i32
    %140 = tpu.assume_multiple %139, 8 : i32
    %141 = arith.index_cast %140 : i32 to index
    %c0_38 = arith.constant 0 : index
    %142 = vector.load %arg7[%141, %c0_38] : memref<64x384xf32, #tpu.memory_space<vmem>>, vector<8x384xf32>
    %c0_39 = arith.constant 0 : index
    %c0_40 = arith.constant 0 : index
    %143 = vector.load %arg2[%c0_39, %c0_40] : memref<128x384xf32, #tpu.memory_space<vmem>>, vector<128x384xf32>
    %cst_41 = arith.constant dense<0.000000e+00> : vector<8x384xf32>
    %144 = tpu.matmul %138, %143, %cst_41 {dimension_numbers = #tpu.dot_dimension_numbers<[1], [0], [0], [1], [0, 0, 1, 1], [], []>} : vector<8x128xf32>, vector<128x384xf32>, vector<8x384xf32> -> vector<8x384xf32>
    %145 = vector.extract_strided_slice %142 {offsets = [0, 0], sizes = [8, 128], strides = [1, 1]} : vector<8x384xf32> to vector<8x128xf32>
    %146 = vector.extract_strided_slice %144 {offsets = [0, 0], sizes = [8, 128], strides = [1, 1]} : vector<8x384xf32> to vector<8x128xf32>
    %147 = arith.addf %145, %146 : vector<8x128xf32>
    %148 = arith.negf %147 : vector<8x128xf32>
    %149 = math.exp %148 : vector<8x128xf32>
    %cst_42 = arith.constant 1.000000e+00 : f32
    %150 = vector.broadcast %cst_42 : f32 to vector<8x128xf32>
    %151 = arith.addf %150, %149 : vector<8x128xf32>
    %152 = arith.divf %150, %151 : vector<8x128xf32>
    %153 = vector.extract_strided_slice %142 {offsets = [0, 128], sizes = [8, 128], strides = [1, 1]} : vector<8x384xf32> to vector<8x128xf32>
    %154 = vector.extract_strided_slice %144 {offsets = [0, 128], sizes = [8, 128], strides = [1, 1]} : vector<8x384xf32> to vector<8x128xf32>
    %155 = arith.addf %153, %154 : vector<8x128xf32>
    %156 = arith.negf %155 : vector<8x128xf32>
    %157 = math.exp %156 : vector<8x128xf32>
    %cst_43 = arith.constant 1.000000e+00 : f32
    %158 = vector.broadcast %cst_43 : f32 to vector<8x128xf32>
    %159 = arith.addf %158, %157 : vector<8x128xf32>
    %160 = arith.divf %158, %159 : vector<8x128xf32>
    %161 = vector.extract_strided_slice %142 {offsets = [0, 256], sizes = [8, 128], strides = [1, 1]} : vector<8x384xf32> to vector<8x128xf32>
    %162 = vector.extract_strided_slice %144 {offsets = [0, 256], sizes = [8, 128], strides = [1, 1]} : vector<8x384xf32> to vector<8x128xf32>
    %163 = arith.addf %162, %13 : vector<8x128xf32>
    %164 = arith.mulf %152, %163 : vector<8x128xf32>
    %165 = arith.addf %161, %164 : vector<8x128xf32>
    %166 = math.tanh %165 : vector<8x128xf32>
    %167 = arith.subf %138, %166 : vector<8x128xf32>
    %168 = arith.mulf %160, %167 : vector<8x128xf32>
    %169 = arith.addf %166, %168 : vector<8x128xf32>
    %c5_i32 = arith.constant 5 : i32
    %c8_i32_44 = arith.constant 8 : i32
    %170 = arith.muli %c5_i32, %c8_i32_44 : i32
    %171 = tpu.assume_multiple %170, 8 : i32
    %172 = arith.index_cast %171 : i32 to index
    %c0_45 = arith.constant 0 : index
    %173 = vector.load %arg7[%172, %c0_45] : memref<64x384xf32, #tpu.memory_space<vmem>>, vector<8x384xf32>
    %c0_46 = arith.constant 0 : index
    %c0_47 = arith.constant 0 : index
    %174 = vector.load %arg2[%c0_46, %c0_47] : memref<128x384xf32, #tpu.memory_space<vmem>>, vector<128x384xf32>
    %cst_48 = arith.constant dense<0.000000e+00> : vector<8x384xf32>
    %175 = tpu.matmul %169, %174, %cst_48 {dimension_numbers = #tpu.dot_dimension_numbers<[1], [0], [0], [1], [0, 0, 1, 1], [], []>} : vector<8x128xf32>, vector<128x384xf32>, vector<8x384xf32> -> vector<8x384xf32>
    %176 = vector.extract_strided_slice %173 {offsets = [0, 0], sizes = [8, 128], strides = [1, 1]} : vector<8x384xf32> to vector<8x128xf32>
    %177 = vector.extract_strided_slice %175 {offsets = [0, 0], sizes = [8, 128], strides = [1, 1]} : vector<8x384xf32> to vector<8x128xf32>
    %178 = arith.addf %176, %177 : vector<8x128xf32>
    %179 = arith.negf %178 : vector<8x128xf32>
    %180 = math.exp %179 : vector<8x128xf32>
    %cst_49 = arith.constant 1.000000e+00 : f32
    %181 = vector.broadcast %cst_49 : f32 to vector<8x128xf32>
    %182 = arith.addf %181, %180 : vector<8x128xf32>
    %183 = arith.divf %181, %182 : vector<8x128xf32>
    %184 = vector.extract_strided_slice %173 {offsets = [0, 128], sizes = [8, 128], strides = [1, 1]} : vector<8x384xf32> to vector<8x128xf32>
    %185 = vector.extract_strided_slice %175 {offsets = [0, 128], sizes = [8, 128], strides = [1, 1]} : vector<8x384xf32> to vector<8x128xf32>
    %186 = arith.addf %184, %185 : vector<8x128xf32>
    %187 = arith.negf %186 : vector<8x128xf32>
    %188 = math.exp %187 : vector<8x128xf32>
    %cst_50 = arith.constant 1.000000e+00 : f32
    %189 = vector.broadcast %cst_50 : f32 to vector<8x128xf32>
    %190 = arith.addf %189, %188 : vector<8x128xf32>
    %191 = arith.divf %189, %190 : vector<8x128xf32>
    %192 = vector.extract_strided_slice %173 {offsets = [0, 256], sizes = [8, 128], strides = [1, 1]} : vector<8x384xf32> to vector<8x128xf32>
    %193 = vector.extract_strided_slice %175 {offsets = [0, 256], sizes = [8, 128], strides = [1, 1]} : vector<8x384xf32> to vector<8x128xf32>
    %194 = arith.addf %193, %13 : vector<8x128xf32>
    %195 = arith.mulf %183, %194 : vector<8x128xf32>
    %196 = arith.addf %192, %195 : vector<8x128xf32>
    %197 = math.tanh %196 : vector<8x128xf32>
    %198 = arith.subf %169, %197 : vector<8x128xf32>
    %199 = arith.mulf %191, %198 : vector<8x128xf32>
    %200 = arith.addf %197, %199 : vector<8x128xf32>
    %c6_i32 = arith.constant 6 : i32
    %c8_i32_51 = arith.constant 8 : i32
    %201 = arith.muli %c6_i32, %c8_i32_51 : i32
    %202 = tpu.assume_multiple %201, 8 : i32
    %203 = arith.index_cast %202 : i32 to index
    %c0_52 = arith.constant 0 : index
    %204 = vector.load %arg7[%203, %c0_52] : memref<64x384xf32, #tpu.memory_space<vmem>>, vector<8x384xf32>
    %c0_53 = arith.constant 0 : index
    %c0_54 = arith.constant 0 : index
    %205 = vector.load %arg2[%c0_53, %c0_54] : memref<128x384xf32, #tpu.memory_space<vmem>>, vector<128x384xf32>
    %cst_55 = arith.constant dense<0.000000e+00> : vector<8x384xf32>
    %206 = tpu.matmul %200, %205, %cst_55 {dimension_numbers = #tpu.dot_dimension_numbers<[1], [0], [0], [1], [0, 0, 1, 1], [], []>} : vector<8x128xf32>, vector<128x384xf32>, vector<8x384xf32> -> vector<8x384xf32>
    %207 = vector.extract_strided_slice %204 {offsets = [0, 0], sizes = [8, 128], strides = [1, 1]} : vector<8x384xf32> to vector<8x128xf32>
    %208 = vector.extract_strided_slice %206 {offsets = [0, 0], sizes = [8, 128], strides = [1, 1]} : vector<8x384xf32> to vector<8x128xf32>
    %209 = arith.addf %207, %208 : vector<8x128xf32>
    %210 = arith.negf %209 : vector<8x128xf32>
    %211 = math.exp %210 : vector<8x128xf32>
    %cst_56 = arith.constant 1.000000e+00 : f32
    %212 = vector.broadcast %cst_56 : f32 to vector<8x128xf32>
    %213 = arith.addf %212, %211 : vector<8x128xf32>
    %214 = arith.divf %212, %213 : vector<8x128xf32>
    %215 = vector.extract_strided_slice %204 {offsets = [0, 128], sizes = [8, 128], strides = [1, 1]} : vector<8x384xf32> to vector<8x128xf32>
    %216 = vector.extract_strided_slice %206 {offsets = [0, 128], sizes = [8, 128], strides = [1, 1]} : vector<8x384xf32> to vector<8x128xf32>
    %217 = arith.addf %215, %216 : vector<8x128xf32>
    %218 = arith.negf %217 : vector<8x128xf32>
    %219 = math.exp %218 : vector<8x128xf32>
    %cst_57 = arith.constant 1.000000e+00 : f32
    %220 = vector.broadcast %cst_57 : f32 to vector<8x128xf32>
    %221 = arith.addf %220, %219 : vector<8x128xf32>
    %222 = arith.divf %220, %221 : vector<8x128xf32>
    %223 = vector.extract_strided_slice %204 {offsets = [0, 256], sizes = [8, 128], strides = [1, 1]} : vector<8x384xf32> to vector<8x128xf32>
    %224 = vector.extract_strided_slice %206 {offsets = [0, 256], sizes = [8, 128], strides = [1, 1]} : vector<8x384xf32> to vector<8x128xf32>
    %225 = arith.addf %224, %13 : vector<8x128xf32>
    %226 = arith.mulf %214, %225 : vector<8x128xf32>
    %227 = arith.addf %223, %226 : vector<8x128xf32>
    %228 = math.tanh %227 : vector<8x128xf32>
    %229 = arith.subf %200, %228 : vector<8x128xf32>
    %230 = arith.mulf %222, %229 : vector<8x128xf32>
    %231 = arith.addf %228, %230 : vector<8x128xf32>
    %c7_i32 = arith.constant 7 : i32
    %c8_i32_58 = arith.constant 8 : i32
    %232 = arith.muli %c7_i32, %c8_i32_58 : i32
    %233 = tpu.assume_multiple %232, 8 : i32
    %234 = arith.index_cast %233 : i32 to index
    %c0_59 = arith.constant 0 : index
    %235 = vector.load %arg7[%234, %c0_59] : memref<64x384xf32, #tpu.memory_space<vmem>>, vector<8x384xf32>
    %c0_60 = arith.constant 0 : index
    %c0_61 = arith.constant 0 : index
    %236 = vector.load %arg2[%c0_60, %c0_61] : memref<128x384xf32, #tpu.memory_space<vmem>>, vector<128x384xf32>
    %cst_62 = arith.constant dense<0.000000e+00> : vector<8x384xf32>
    %237 = tpu.matmul %231, %236, %cst_62 {dimension_numbers = #tpu.dot_dimension_numbers<[1], [0], [0], [1], [0, 0, 1, 1], [], []>} : vector<8x128xf32>, vector<128x384xf32>, vector<8x384xf32> -> vector<8x384xf32>
    %238 = vector.extract_strided_slice %235 {offsets = [0, 0], sizes = [8, 128], strides = [1, 1]} : vector<8x384xf32> to vector<8x128xf32>
    %239 = vector.extract_strided_slice %237 {offsets = [0, 0], sizes = [8, 128], strides = [1, 1]} : vector<8x384xf32> to vector<8x128xf32>
    %240 = arith.addf %238, %239 : vector<8x128xf32>
    %241 = arith.negf %240 : vector<8x128xf32>
    %242 = math.exp %241 : vector<8x128xf32>
    %cst_63 = arith.constant 1.000000e+00 : f32
    %243 = vector.broadcast %cst_63 : f32 to vector<8x128xf32>
    %244 = arith.addf %243, %242 : vector<8x128xf32>
    %245 = arith.divf %243, %244 : vector<8x128xf32>
    %246 = vector.extract_strided_slice %235 {offsets = [0, 128], sizes = [8, 128], strides = [1, 1]} : vector<8x384xf32> to vector<8x128xf32>
    %247 = vector.extract_strided_slice %237 {offsets = [0, 128], sizes = [8, 128], strides = [1, 1]} : vector<8x384xf32> to vector<8x128xf32>
    %248 = arith.addf %246, %247 : vector<8x128xf32>
    %249 = arith.negf %248 : vector<8x128xf32>
    %250 = math.exp %249 : vector<8x128xf32>
    %cst_64 = arith.constant 1.000000e+00 : f32
    %251 = vector.broadcast %cst_64 : f32 to vector<8x128xf32>
    %252 = arith.addf %251, %250 : vector<8x128xf32>
    %253 = arith.divf %251, %252 : vector<8x128xf32>
    %254 = vector.extract_strided_slice %235 {offsets = [0, 256], sizes = [8, 128], strides = [1, 1]} : vector<8x384xf32> to vector<8x128xf32>
    %255 = vector.extract_strided_slice %237 {offsets = [0, 256], sizes = [8, 128], strides = [1, 1]} : vector<8x384xf32> to vector<8x128xf32>
    %256 = arith.addf %255, %13 : vector<8x128xf32>
    %257 = arith.mulf %245, %256 : vector<8x128xf32>
    %258 = arith.addf %254, %257 : vector<8x128xf32>
    %259 = math.tanh %258 : vector<8x128xf32>
    %260 = arith.subf %231, %259 : vector<8x128xf32>
    %261 = arith.mulf %253, %260 : vector<8x128xf32>
    %262 = arith.addf %259, %261 : vector<8x128xf32>
    %c8_i32_65 = arith.constant 8 : i32
    %c0_66 = arith.constant 0 : index
    %c0_67 = arith.constant 0 : index
    %263 = vector.load %arg4[%c0_66, %c0_67] : memref<128x128xf32, #tpu.memory_space<vmem>>, vector<128x128xf32>
    %cst_68 = arith.constant dense<0.000000e+00> : vector<8x128xf32>
    %264 = tpu.matmul %262, %263, %cst_68 {dimension_numbers = #tpu.dot_dimension_numbers<[1], [0], [0], [1], [0, 0, 1, 1], [], []>} : vector<8x128xf32>, vector<128x128xf32>, vector<8x128xf32> -> vector<8x128xf32>
    %c0_69 = arith.constant 0 : index
    %c0_70 = arith.constant 0 : index
    %265 = vector.load %arg5[%c0_69, %c0_70] : memref<1x128xf32, #tpu.memory_space<vmem>>, vector<1x128xf32>
    %266 = vector.broadcast %265 : vector<1x128xf32> to vector<8x128xf32>
    %267 = arith.addf %264, %266 : vector<8x128xf32>
    %c0_71 = arith.constant 0 : index
    %c0_72 = arith.constant 0 : index
    %268 = vector.load %arg6[%c0_71, %c0_72] : memref<8x128xf32, #tpu.memory_space<vmem>>, vector<8x128xf32>
    tpu.vector_store %arg6[%c0_71, %c0_72], %267 {strides = array<i32>} : memref<8x128xf32, #tpu.memory_space<vmem>>, vector<8x128xf32>,
    return
  }
}

</mosaic_0001>

<llo_original>
// kernel: banned_word_classifier_forward.1
$region0: #{banned_word_classifier_forward.1}
  #allocation0 [shape = 'u32[]', space=smem, size = 0x4, offset = 0x4, fixed_abs, tag = 'smem constant byte address 0x4 - core index']
  #allocation1 [shape = 'u32[144,128]{1,0:T(1,128)}', space=vmem, size = 0x12000, scoped, tag = 'internal scratch']
  #allocation2 [shape = 'f32[64,384]{1,0:T(8,128)}', space=vmem, size = 0x18000, scoped, tag = 'scratch operand']
  %s0 = inlined_call_operand.vmem [shape: s32[64,1], index: 0, kind: input, shape index: {}]
  %s1 = inlined_call_operand.hbm [shape: f32[128,384], index: 1, kind: input, shape index: {}]
  %s2 = inlined_call_operand.hbm [shape: f32[128,384], index: 2, kind: input, shape index: {}]
  %s3 = inlined_call_operand.vmem [shape: f32[1,128], index: 3, kind: input, shape index: {}]
  %s4 = inlined_call_operand.hbm [shape: f32[128,128], index: 4, kind: input, shape index: {}]
  %s5 = inlined_call_operand.vmem [shape: f32[1,128], index: 5, kind: input, shape index: {}]
  %s6 = inlined_call_operand.vmem [shape: f32[8,128], index: 6, kind: output, shape index: {}]
  %s7 = sld [smem:[#allocation0]]
  $region46: #{banned_word_classifier_forward.1} parent=0
    _
  %s9 = ssub.s32 1, %s7
  %s10 = scalar_select 0, %s9, %s7
  $region1: #{banned_word_classifier_forward.1} parent=0
    #allocation3 [shape = 'u8[196608]{0}', space=vmem, size = 0x30000, scoped, tag = 'input window, operand 1, single buffered']
    #allocation4 [shape = 's32[1]{0}', space=sflag, size = 0x4, scoped, tag = 'scoped memory for banned_word_classifier_forward.1']
    #allocation5 [shape = 'u8[196608]{0}', space=vmem, size = 0x30000, scoped, tag = 'input window, operand 2, single buffered']
    #allocation6 [shape = 's32[1]{0}', space=sflag, size = 0x4, scoped, tag = 'scoped memory for banned_word_classifier_forward.1']
    #allocation7 [shape = 'u8[65536]{0}', space=vmem, size = 0x10000, scoped, tag = 'input window, operand 4, single buffered']
    %11 = vsyncpa [#allocation4], 0
    %12 = vsyncpa [#allocation6], 0
    // Predicated region
    $region2: #{banned_word_classifier_forward.1} parent=1 // pred_check
      _
    $region3: #{banned_word_classifier_forward.1} parent=1 // pred_check_branch
      %14 = sbr.rel (0) target = $region5
    $region4: #{banned_word_classifier_forward.1} parent=1 // pred_region
      _
    $region5: #{banned_word_classifier_forward.1} parent=1 // pred_fallthru
      _
    // Predicated region
    $region6: #{banned_word_classifier_forward.1} parent=1 // pred_check
      _
    $region7: #{banned_word_classifier_forward.1} parent=1 // pred_check_branch
      %16 = sbr.rel (0) target = $region9
    $region8: #{banned_word_classifier_forward.1} parent=1 // pred_region
      %s18 = ssub.s32 6144, 6144
      %19 = vsyncadd [#allocation4], %s18
      %s20 = sshll.u32 [#allocation3], 4
      %s21 = int_to_ptr.vmem [resolvable:$true] %s20
      %26 = dma.hbm_to_vmem [thread:$0]  %s1, 6144, %s21, [#allocation4], 384, 384, 24
    $region9: #{banned_word_classifier_forward.1} parent=1 // pred_fallthru
      _
    // Predicated region
    $region10: #{banned_word_classifier_forward.1} parent=1 // pred_check
      _
    $region11: #{banned_word_classifier_forward.1} parent=1 // pred_check_branch
      %28 = sbr.rel (0) target = $region13
    $region12: #{banned_word_classifier_forward.1} parent=1 // pred_region
      %s30 = ssub.s32 6144, 6144
      %31 = vsyncadd [#allocation6], %s30
      %s32 = sshll.u32 [#allocation5], 4
      %s33 = int_to_ptr.vmem [resolvable:$true] %s32
      %38 = dma.hbm_to_vmem [thread:$0]  %s2, 6144, %s33, [#allocation6], 384, 384, 24
    $region13: #{banned_word_classifier_forward.1} parent=1 // pred_fallthru
      _
    // Predicated region
    $region14: #{banned_word_classifier_forward.1} parent=1 // pred_check
      _
    $region15: #{banned_word_classifier_forward.1} parent=1 // pred_check_branch
      %40 = sbr.rel (0) target = $region17
    $region16: #{banned_word_classifier_forward.1} parent=1 // pred_region
      _
    $region17: #{banned_word_classifier_forward.1} parent=1 // pred_fallthru
      _
    // Predicated region
    $region18: #{banned_word_classifier_forward.1} parent=1 // pred_check
      _
    $region19: #{banned_word_classifier_forward.1} parent=1 // pred_check_branch
      %42 = sbr.rel (0) target = $region21
    $region20: #{banned_word_classifier_forward.1} parent=1 // pred_region
      %s44 = ssub.s32 2048, 2048
      %45 = vsyncadd [#allocation6], %s44
      %s46 = sshll.u32 [#allocation7], 4
      %s47 = int_to_ptr.vmem [resolvable:$true] %s46
      %52 = dma.hbm_to_vmem [thread:$0]  %s4, 2048, %s47, [#allocation6], 128, 128, 8
    $region21: #{banned_word_classifier_forward.1} parent=1 // pred_fallthru
      _
    // Predicated region
    $region22: #{banned_word_classifier_forward.1} parent=1 // pred_check
      _
    $region23: #{banned_word_classifier_forward.1} parent=1 // pred_check_branch
      %54 = sbr.rel (0) target = $region25
    $region24: #{banned_word_classifier_forward.1} parent=1 // pred_region
      _
    $region25: #{banned_word_classifier_forward.1} parent=1 // pred_fallthru
      _
    // Predicated region
    $region26: #{banned_word_classifier_forward.1} parent=1 // pred_check
      _
    $region27: #{banned_word_classifier_forward.1} parent=1 // pred_check_branch
      %56 = sbr.rel (0) target = $region29
    $region28: #{banned_word_classifier_forward.1} parent=1 // pred_region
      %57 = dma.done [#allocation4], 6144
    $region29: #{banned_word_classifier_forward.1} parent=1 // pred_fallthru
      _
    // Predicated region
    $region30: #{banned_word_classifier_forward.1} parent=1 // pred_check
      _
    $region31: #{banned_word_classifier_forward.1} parent=1 // pred_check_branch
      %59 = sbr.rel (0) target = $region33
    $region32: #{banned_word_classifier_forward.1} parent=1 // pred_region
      %60 = dma.done [#allocation6], 6144
    $region33: #{banned_word_classifier_forward.1} parent=1 // pred_fallthru
      _
    // Predicated region
    $region34: #{banned_word_classifier_forward.1} parent=1 // pred_check
      _
    $region35: #{banned_word_classifier_forward.1} parent=1 // pred_check_branch
      %62 = sbr.rel (0) target = $region37
    $region36: #{banned_word_classifier_forward.1} parent=1 // pred_region
      %63 = dma.done [#allocation6], 2048
    $region37: #{banned_word_classifier_forward.1} parent=1 // pred_fallthru
      _
    %v64 = vld [vmem:[%s0] sm:$0xff]
    %v65 = vld [vmem:[%s0 + $0x8] sm:$0xff]
    %v66 = vld [vmem:[%s0 + $0x10] sm:$0xff]
    %v67 = vld [vmem:[%s0 + $0x18] sm:$0xff]
    %v68 = vld [vmem:[%s0 + $0x20] sm:$0xff]
    %v69 = vld [vmem:[%s0 + $0x28] sm:$0xff]
    %v70 = vld [vmem:[%s0 + $0x30] sm:$0xff]
    %v71 = vld [vmem:[%s0 + $0x38] sm:$0xff]
    %72 = vset.pattern.permute.xlu0 0
    %73 = vperm.xlu0 %72, %v64
    %v74 = vpop.permute.xlu0 %73
    %75 = vset.pattern.permute.xlu0 0
    %76 = vperm.xlu0 %75, %v65
    %v77 = vpop.permute.xlu0 %76
    %78 = vset.pattern.permute.xlu0 0
    %79 = vperm.xlu0 %78, %v66
    %v80 = vpop.permute.xlu0 %79
    %81 = vset.pattern.permute.xlu0 0
    %82 = vperm.xlu0 %81, %v67
    %v83 = vpop.permute.xlu0 %82
    %84 = vset.pattern.permute.xlu0 0
    %85 = vperm.xlu0 %84, %v68
    %v86 = vpop.permute.xlu0 %85
    %87 = vset.pattern.permute.xlu0 0
    %88 = vperm.xlu0 %87, %v69
    %v89 = vpop.permute.xlu0 %88
    %90 = vset.pattern.permute.xlu0 0
    %91 = vperm.xlu0 %90, %v70
    %v92 = vpop.permute.xlu0 %91
    %93 = vset.pattern.permute.xlu0 0
    %94 = vperm.xlu0 %93, %v71
    %v95 = vpop.permute.xlu0 %94
    %v96 = vlaneseq
    %v97 = vand.u32 %v96, 127
    %vm98 = vcmp.eq.s32.totalorder %v74, %v97
    %vm99 = vcmp.eq.s32.totalorder %v77, %v97
    %vm100 = vcmp.eq.s32.totalorder %v80, %v97
    %vm101 = vcmp.eq.s32.totalorder %v83, %v97
    %vm102 = vcmp.eq.s32.totalorder %v86, %v97
    %vm103 = vcmp.eq.s32.totalorder %v89, %v97
    %vm104 = vcmp.eq.s32.totalorder %v92, %v97
    %vm105 = vcmp.eq.s32.totalorder %v95, %v97
    %v106 = vsel %vm98, 1.0, 0.0
    %v107 = vsel %vm99, 1.0, 0.0
    %v108 = vsel %vm100, 1.0, 0.0
    %v109 = vsel %vm101, 1.0, 0.0
    %v110 = vsel %vm102, 1.0, 0.0
    %v111 = vsel %vm103, 1.0, 0.0
    %v112 = vsel %vm104, 1.0, 0.0
    %v113 = vsel %vm105, 1.0, 0.0
    %v114 = vld [vmem:[#allocation3] sm:$0xff]
    %v115 = vld [vmem:[#allocation3 + $0x8] sm:$0xff]
    %v116 = vld [vmem:[#allocation3 + $0x10] sm:$0xff]
    %v117 = vld [vmem:[#allocation3 + $0x18] sm:$0xff]
    %v118 = vld [vmem:[#allocation3 + $0x20] sm:$0xff]
    %v119 = vld [vmem:[#allocation3 + $0x28] sm:$0xff]
    %v120 = vld [vmem:[#allocation3 + $0x30] sm:$0xff]
    %v121 = vld [vmem:[#allocation3 + $0x38] sm:$0xff]
    %v122 = vld [vmem:[#allocation3 + $0x40] sm:$0xff]
    %v123 = vld [vmem:[#allocation3 + $0x48] sm:$0xff]
    %v124 = vld [vmem:[#allocation3 + $0x50] sm:$0xff]
    %v125 = vld [vmem:[#allocation3 + $0x58] sm:$0xff]
    %v126 = vld [vmem:[#allocation3 + $0x60] sm:$0xff]
    %v127 = vld [vmem:[#allocation3 + $0x68] sm:$0xff]
    %v128 = vld [vmem:[#allocation3 + $0x70] sm:$0xff]
    %v129 = vld [vmem:[#allocation3 + $0x78] sm:$0xff]
    %v130 = vld [vmem:[#allocation3 + $0x80] sm:$0xff]
    %v131 = vld [vmem:[#allocation3 + $0x88] sm:$0xff]
    %v132 = vld [vmem:[#allocation3 + $0x90] sm:$0xff]
    %v133 = vld [vmem:[#allocation3 + $0x98] sm:$0xff]
    %v134 = vld [vmem:[#allocation3 + $0xa0] sm:$0xff]
    %v135 = vld [vmem:[#allocation3 + $0xa8] sm:$0xff]
    %v136 = vld [vmem:[#allocation3 + $0xb0] sm:$0xff]
    %v137 = vld [vmem:[#allocation3 + $0xb8] sm:$0xff]
    %v138 = vld [vmem:[#allocation3 + $0xc0] sm:$0xff]
    %v139 = vld [vmem:[#allocation3 + $0xc8] sm:$0xff]
    %v140 = vld [vmem:[#allocation3 + $0xd0] sm:$0xff]
    %v141 = vld [vmem:[#allocation3 + $0xd8] sm:$0xff]
    %v142 = vld [vmem:[#allocation3 + $0xe0] sm:$0xff]
    %v143 = vld [vmem:[#allocation3 + $0xe8] sm:$0xff]
    %v144 = vld [vmem:[#allocation3 + $0xf0] sm:$0xff]
    %v145 = vld [vmem:[#allocation3 + $0xf8] sm:$0xff]
    %v146 = vld [vmem:[#allocation3 + $0x100] sm:$0xff]
    %v147 = vld [vmem:[#allocation3 + $0x108] sm:$0xff]
    %v148 = vld [vmem:[#allocation3 + $0x110] sm:$0xff]
    %v149 = vld [vmem:[#allocation3 + $0x118] sm:$0xff]
    %v150 = vld [vmem:[#allocation3 + $0x120] sm:$0xff]
    %v151 = vld [vmem:[#allocation3 + $0x128] sm:$0xff]
    %v152 = vld [vmem:[#allocation3 + $0x130] sm:$0xff]
    %v153 = vld [vmem:[#allocation3 + $0x138] sm:$0xff]
    %v154 = vld [vmem:[#allocation3 + $0x140] sm:$0xff]
    %v155 = vld [vmem:[#allocation3 + $0x148] sm:$0xff]
    %v156 = vld [vmem:[#allocation3 + $0x150] sm:$0xff]
    %v157 = vld [vmem:[#allocation3 + $0x158] sm:$0xff]
    %v158 = vld [vmem:[#allocation3 + $0x160] sm:$0xff]
    %v159 = vld [vmem:[#allocation3 + $0x168] sm:$0xff]
    %v160 = vld [vmem:[#allocation3 + $0x170] sm:$0xff]
    %v161 = vld [vmem:[#allocation3 + $0x178] sm:$0xff]
    %162 = vmatprep.subr.mxu0 %v160
    %163 = vmatpush1.msra.mxu0 %v159
    %164 = vmatprep.subr.mxu0 %v157
    %165 = vmatpush1.msra.mxu0 %v156
    %166 = vmatprep.subr.mxu0 %v154
    %167 = vmatpush1.msra.mxu0 %v153
    %168 = vmatprep.subr.mxu0 %v151
    %169 = vmatpush1.msra.mxu0 %v150
    %170 = vmatprep.subr.mxu0 %v148
    %171 = vmatpush1.msra.mxu0 %v147
    %172 = vmatprep.subr.mxu0 %v145
    %173 = vmatpush1.msra.mxu0 %v144
    %174 = vmatprep.subr.mxu0 %v142
    %175 = vmatpush1.msra.mxu0 %v141
    %176 = vmatprep.subr.mxu0 %v139
    %177 = vmatpush1.msra.mxu0 %v138
    %178 = vmatprep.subr.mxu0 %v136
    %179 = vmatpush1.msra.mxu0 %v135
    %180 = vmatprep.subr.mxu0 %v133
    %181 = vmatpush1.msra.mxu0 %v132
    %182 = vmatprep.subr.mxu0 %v130
    %183 = vmatpush1.msra.mxu0 %v129
    %184 = vmatprep.subr.mxu0 %v127
    %185 = vmatpush1.msra.mxu0 %v126
    %186 = vmatprep.subr.mxu0 %v124
    %187 = vmatpush1.msra.mxu0 %v123
    %188 = vmatprep.subr.mxu0 %v121
    %189 = vmatpush1.msra.mxu0 %v120
    %190 = vmatprep.subr.mxu0 %v118
    %191 = vmatpush1.msra.mxu0 %v117
    %192 = vmatprep.subr.mxu0 %v115
    %193 = vmatpush1.msra.mxu0 %v114
    %194 = vmatprep.subr.mxu0 0.0
    %195 = vmatpush2.msra.mxu0 0.0
    %196 = vmatprep.subr.mxu0 0.0
    %197 = vmatpush2.msra.mxu0 0.0
    %198 = vmatprep.subr.mxu0 0.0
    %199 = vmatpush2.msra.mxu0 0.0
    %200 = vmatprep.subr.mxu0 0.0
    %201 = vmatpush2.msra.mxu0 0.0
    %202 = vmatprep.subr.mxu0 0.0
    %203 = vmatpush2.msra.mxu0 0.0
    %204 = vmatprep.subr.mxu0 0.0
    %205 = vmatpush2.msra.mxu0 0.0
    %206 = vmatprep.subr.mxu0 0.0
    %207 = vmatpush2.msra.mxu0 0.0
    %208 = vmatprep.subr.mxu0 0.0
    %209 = vmatpush2.msra.mxu0 0.0
    %210 = vmatprep.subr.mxu0 0.0
    %211 = vmatpush2.msra.mxu0 0.0
    %212 = vmatprep.subr.mxu0 0.0
    %213 = vmatpush2.msra.mxu0 0.0
    %214 = vmatprep.subr.mxu0 0.0
    %215 = vmatpush2.msra.mxu0 0.0
    %216 = vmatprep.subr.mxu0 0.0
    %217 = vmatpush2.msra.mxu0 0.0
    %218 = vmatprep.subr.mxu0 0.0
    %219 = vmatpush2.msra.mxu0 0.0
    %220 = vmatprep.subr.mxu0 0.0
    %221 = vmatpush2.msra.mxu0 0.0
    %222 = vmatprep.subr.mxu0 0.0
    %223 = vmatpush2.msra.mxu0 0.0
    %224 = vmatprep.subr.mxu0 0.0
    %225 = vmatpush2.msra.mxu0 0.0
    %226 = vmatprep.mubr.f32.mxu0 0.0
    %227 = vmatmul.mubr.f32.gmra.mxu0 %v106
    %v228 = vpop.f32.mrf.mxu0
    %v229 = vadd.f32 0.0, %v228
    %v230 = vpop.f32.mrf.mxu0
    %v231 = vadd.f32 0.0, %v230
    %232 = vmatprep.mubr.f32.mxu0 0.0
    %233 = vmatmul.mubr.f32.gmra.mxu0 %v107
    %v234 = vpop.f32.mrf.mxu0
    %v235 = vadd.f32 0.0, %v234
    %v236 = vpop.f32.mrf.mxu0
    %v237 = vadd.f32 0.0, %v236
    %238 = vmatprep.mubr.f32.mxu0 0.0
    %239 = vmatmul.mubr.f32.gmra.mxu0 %v108
    %v240 = vpop.f32.mrf.mxu0
    %v241 = vadd.f32 0.0, %v240
    %v242 = vpop.f32.mrf.mxu0
    %v243 = vadd.f32 0.0, %v242
    %244 = vmatprep.mubr.f32.mxu0 0.0
    %245 = vmatmul.mubr.f32.gmra.mxu0 %v109
    %v246 = vpop.f32.mrf.mxu0
    %v247 = vadd.f32 0.0, %v246
    %v248 = vpop.f32.mrf.mxu0
    %v249 = vadd.f32 0.0, %v248
    %250 = vmatprep.mubr.f32.mxu0 0.0
    %251 = vmatmul.mubr.f32.gmra.mxu0 %v110
    %v252 = vpop.f32.mrf.mxu0
    %v253 = vadd.f32 0.0, %v252
    %v254 = vpop.f32.mrf.mxu0
    %v255 = vadd.f32 0.0, %v254
    %256 = vmatprep.mubr.f32.mxu0 0.0
    %257 = vmatmul.mubr.f32.gmra.mxu0 %v111
    %v258 = vpop.f32.mrf.mxu0
    %v259 = vadd.f32 0.0, %v258
    %v260 = vpop.f32.mrf.mxu0
    %v261 = vadd.f32 0.0, %v260
    %262 = vmatprep.mubr.f32.mxu0 0.0
    %263 = vmatmul.mubr.f32.gmra.mxu0 %v112
    %v264 = vpop.f32.mrf.mxu0
    %v265 = vadd.f32 0.0, %v264
    %v266 = vpop.f32.mrf.mxu0
    %v267 = vadd.f32 0.0, %v266
    %268 = vmatprep.mubr.f32.mxu0 0.0
    %269 = vmatmul.mubr.f32.gmra.mxu0 %v113
    %v270 = vpop.f32.mrf.mxu0
    %v271 = vadd.f32 0.0, %v270
    %v272 = vpop.f32.mrf.mxu0
    %v273 = vadd.f32 0.0, %v272
    %274 = vdwg.mxu0
    %275 = vmatprep.subr.mxu0 0.0
    %276 = vmatpush1.msra.mxu0 %v161
    %277 = vmatprep.subr.mxu0 0.0
    %278 = vmatpush1.msra.mxu0 %v158
    %279 = vmatprep.subr.mxu0 0.0
    %280 = vmatpush1.msra.mxu0 %v155
    %281 = vmatprep.subr.mxu0 0.0
    %282 = vmatpush1.msra.mxu0 %v152
    %283 = vmatprep.subr.mxu0 0.0
    %284 = vmatpush1.msra.mxu0 %v149
    %285 = vmatprep.subr.mxu0 0.0
    %286 = vmatpush1.msra.mxu0 %v146
    %287 = vmatprep.subr.mxu0 0.0
    %288 = vmatpush1.msra.mxu0 %v143
    %289 = vmatprep.subr.mxu0 0.0
    %290 = vmatpush1.msra.mxu0 %v140
    %291 = vmatprep.subr.mxu0 0.0
    %292 = vmatpush1.msra.mxu0 %v137
    %293 = vmatprep.subr.mxu0 0.0
    %294 = vmatpush1.msra.mxu0 %v134
    %295 = vmatprep.subr.mxu0 0.0
    %296 = vmatpush1.msra.mxu0 %v131
    %297 = vmatprep.subr.mxu0 0.0
    %298 = vmatpush1.msra.mxu0 %v128
    %299 = vmatprep.subr.mxu0 0.0
    %300 = vmatpush1.msra.mxu0 %v125
    %301 = vmatprep.subr.mxu0 0.0
    %302 = vmatpush1.msra.mxu0 %v122
    %303 = vmatprep.subr.mxu0 0.0
    %304 = vmatpush1.msra.mxu0 %v119
    %305 = vmatprep.subr.mxu0 0.0
    %306 = vmatpush1.msra.mxu0 %v116
    %307 = vmatprep.subr.mxu0 0.0
    %308 = vmatpush2.msra.mxu0 0.0
    %309 = vmatprep.subr.mxu0 0.0
    %310 = vmatpush2.msra.mxu0 0.0
    %311 = vmatprep.subr.mxu0 0.0
    %312 = vmatpush2.msra.mxu0 0.0
    %313 = vmatprep.subr.mxu0 0.0
    %314 = vmatpush2.msra.mxu0 0.0
    %315 = vmatprep.subr.mxu0 0.0
    %316 = vmatpush2.msra.mxu0 0.0
    %317 = vmatprep.subr.mxu0 0.0
    %318 = vmatpush2.msra.mxu0 0.0
    %319 = vmatprep.subr.mxu0 0.0
    %320 = vmatpush2.msra.mxu0 0.0
    %321 = vmatprep.subr.mxu0 0.0
    %322 = vmatpush2.msra.mxu0 0.0
    %323 = vmatprep.subr.mxu0 0.0
    %324 = vmatpush2.msra.mxu0 0.0
    %325 = vmatprep.subr.mxu0 0.0
    %326 = vmatpush2.msra.mxu0 0.0
    %327 = vmatprep.subr.mxu0 0.0
    %328 = vmatpush2.msra.mxu0 0.0
    %329 = vmatprep.subr.mxu0 0.0
    %330 = vmatpush2.msra.mxu0 0.0
    %331 = vmatprep.subr.mxu0 0.0
    %332 = vmatpush2.msra.mxu0 0.0
    %333 = vmatprep.subr.mxu0 0.0
    %334 = vmatpush2.msra.mxu0 0.0
    %335 = vmatprep.subr.mxu0 0.0
    %336 = vmatpush2.msra.mxu0 0.0
    %337 = vmatprep.subr.mxu0 0.0
    %338 = vmatpush2.msra.mxu0 0.0
    %339 = vmatprep.mubr.f32.mxu0 0.0
    %340 = vmatmul.mubr.f32.gmra.mxu0 %v106
    %v341 = vpop.f32.mrf.mxu0
    %v342 = vadd.f32 0.0, %v341
    %v343 = vpop.f32.mrf.mxu0
    %344 = vmatprep.mubr.f32.mxu0 0.0
    %345 = vmatmul.mubr.f32.gmra.mxu0 %v107
    %v346 = vpop.f32.mrf.mxu0
    %v347 = vadd.f32 0.0, %v346
    %v348 = vpop.f32.mrf.mxu0
    %349 = vmatprep.mubr.f32.mxu0 0.0
    %350 = vmatmul.mubr.f32.gmra.mxu0 %v108
    %v351 = vpop.f32.mrf.mxu0
    %v352 = vadd.f32 0.0, %v351
    %v353 = vpop.f32.mrf.mxu0
    %354 = vmatprep.mubr.f32.mxu0 0.0
    %355 = vmatmul.mubr.f32.gmra.mxu0 %v109
    %v356 = vpop.f32.mrf.mxu0
    %v357 = vadd.f32 0.0, %v356
    %v358 = vpop.f32.mrf.mxu0
    %359 = vmatprep.mubr.f32.mxu0 0.0
    %360 = vmatmul.mubr.f32.gmra.mxu0 %v110
    %v361 = vpop.f32.mrf.mxu0
    %v362 = vadd.f32 0.0, %v361
    %v363 = vpop.f32.mrf.mxu0
    %364 = vmatprep.mubr.f32.mxu0 0.0
    %365 = vmatmul.mubr.f32.gmra.mxu0 %v111
    %v366 = vpop.f32.mrf.mxu0
    %v367 = vadd.f32 0.0, %v366
    %v368 = vpop.f32.mrf.mxu0
    %369 = vmatprep.mubr.f32.mxu0 0.0
    %370 = vmatmul.mubr.f32.gmra.mxu0 %v112
    %v371 = vpop.f32.mrf.mxu0
    %v372 = vadd.f32 0.0, %v371
    %v373 = vpop.f32.mrf.mxu0
    %374 = vmatprep.mubr.f32.mxu0 0.0
    %375 = vmatmul.mubr.f32.gmra.mxu0 %v113
    %v376 = vpop.f32.mrf.mxu0
    %v377 = vadd.f32 0.0, %v376
    %v378 = vpop.f32.mrf.mxu0
    %379 = vdwg.mxu0
    %380 = vst [vmem:[#allocation2] sm:$0xff] %v229
    %381 = vst [vmem:[#allocation2 + $0x8] sm:$0xff] %v231
    %382 = vst [vmem:[#allocation2 + $0x10] sm:$0xff] %v342
    %383 = vst [vmem:[#allocation2 + $0x18] sm:$0xff] %v235
    %384 = vst [vmem:[#allocation2 + $0x20] sm:$0xff] %v237
    %385 = vst [vmem:[#allocation2 + $0x28] sm:$0xff] %v347
    %386 = vst [vmem:[#allocation2 + $0x30] sm:$0xff] %v241
    %387 = vst [vmem:[#allocation2 + $0x38] sm:$0xff] %v243
    %388 = vst [vmem:[#allocation2 + $0x40] sm:$0xff] %v352
    %389 = vst [vmem:[#allocation2 + $0x48] sm:$0xff] %v247
    %390 = vst [vmem:[#allocation2 + $0x50] sm:$0xff] %v249
    %391 = vst [vmem:[#allocation2 + $0x58] sm:$0xff] %v357
    %392 = vst [vmem:[#allocation2 + $0x60] sm:$0xff] %v253
    %393 = vst [vmem:[#allocation2 + $0x68] sm:$0xff] %v255
    %394 = vst [vmem:[#allocation2 + $0x70] sm:$0xff] %v362
    %395 = vst [vmem:[#allocation2 + $0x78] sm:$0xff] %v259
    %396 = vst [vmem:[#allocation2 + $0x80] sm:$0xff] %v261
    %397 = vst [vmem:[#allocation2 + $0x88] sm:$0xff] %v367
    %398 = vst [vmem:[#allocation2 + $0x90] sm:$0xff] %v265
    %399 = vst [vmem:[#allocation2 + $0x98] sm:$0xff] %v267
    %400 = vst [vmem:[#allocation2 + $0xa0] sm:$0xff] %v372
    %401 = vst [vmem:[#allocation2 + $0xa8] sm:$0xff] %v271
    %402 = vst [vmem:[#allocation2 + $0xb0] sm:$0xff] %v273
    %403 = vst [vmem:[#allocation2 + $0xb8] sm:$0xff] %v377
    %v404 = vld [vmem:[%s3] sm:$0x1]
    %v406 = vlaneseq
    %v407 = vshrl.u32 %v406, 7
    %v408 = vsub.s32 0, %v407
    %v409 = vrot.slane %v404, %v408
    %s411 = smul.u32 0, 3
    %s412 = smul.addr %s411, 8
    %s413 = scalar_lea.vmem [#allocation2], %s412
    %v414 = vld [vmem:[%s413] sm:$0xff]
    %v415 = vld [vmem:[%s413 + $0x8] sm:$0xff]
    %v416 = vld [vmem:[%s413 + $0x10] sm:$0xff]
    %v417 = vld [vmem:[#allocation5] sm:$0xff]
    %v418 = vld [vmem:[#allocation5 + $0x8] sm:$0xff]
    %v419 = vld [vmem:[#allocation5 + $0x10] sm:$0xff]
    %v420 = vld [vmem:[#allocation5 + $0x18] sm:$0xff]
    %v421 = vld [vmem:[#allocation5 + $0x20] sm:$0xff]
    %v422 = vld [vmem:[#allocation5 + $0x28] sm:$0xff]
    %v423 = vld [vmem:[#allocation5 + $0x30] sm:$0xff]
    %v424 = vld [vmem:[#allocation5 + $0x38] sm:$0xff]
    %v425 = vld [vmem:[#allocation5 + $0x40] sm:$0xff]
    %v426 = vld [vmem:[#allocation5 + $0x48] sm:$0xff]
    %v427 = vld [vmem:[#allocation5 + $0x50] sm:$0xff]
    %v428 = vld [vmem:[#allocation5 + $0x58] sm:$0xff]
    %v429 = vld [vmem:[#allocation5 + $0x60] sm:$0xff]
    %v430 = vld [vmem:[#allocation5 + $0x68] sm:$0xff]
    %v431 = vld [vmem:[#allocation5 + $0x70] sm:$0xff]
    %v432 = vld [vmem:[#allocation5 + $0x78] sm:$0xff]
    %v433 = vld [vmem:[#allocation5 + $0x80] sm:$0xff]
    %v434 = vld [vmem:[#allocation5 + $0x88] sm:$0xff]
    %v435 = vld [vmem:[#allocation5 + $0x90] sm:$0xff]
    %v436 = vld [vmem:[#allocation5 + $0x98] sm:$0xff]
    %v437 = vld [vmem:[#allocation5 + $0xa0] sm:$0xff]
    %v438 = vld [vmem:[#allocation5 + $0xa8] sm:$0xff]
    %v439 = vld [vmem:[#allocation5 + $0xb0] sm:$0xff]
    %v440 = vld [vmem:[#allocation5 + $0xb8] sm:$0xff]
    %v441 = vld [vmem:[#allocation5 + $0xc0] sm:$0xff]
    %v442 = vld [vmem:[#allocation5 + $0xc8] sm:$0xff]
    %v443 = vld [vmem:[#allocation5 + $0xd0] sm:$0xff]
    %v444 = vld [vmem:[#allocation5 + $0xd8] sm:$0xff]
    %v445 = vld [vmem:[#allocation5 + $0xe0] sm:$0xff]
    %v446 = vld [vmem:[#allocation5 + $0xe8] sm:$0xff]
    %v447 = vld [vmem:[#allocation5 + $0xf0] sm:$0xff]
    %v448 = vld [vmem:[#allocation5 + $0xf8] sm:$0xff]
    %v449 = vld [vmem:[#allocation5 + $0x100] sm:$0xff]
    %v450 = vld [vmem:[#allocation5 + $0x108] sm:$0xff]
    %v451 = vld [vmem:[#allocation5 + $0x110] sm:$0xff]
    %v452 = vld [vmem:[#allocation5 + $0x118] sm:$0xff]
    %v453 = vld [vmem:[#allocation5 + $0x120] sm:$0xff]
    %v454 = vld [vmem:[#allocation5 + $0x128] sm:$0xff]
    %v455 = vld [vmem:[#allocation5 + $0x130] sm:$0xff]
    %v456 = vld [vmem:[#allocation5 + $0x138] sm:$0xff]
    %v457 = vld [vmem:[#allocation5 + $0x140] sm:$0xff]
    %v458 = vld [vmem:[#allocation5 + $0x148] sm:$0xff]
    %v459 = vld [vmem:[#allocation5 + $0x150] sm:$0xff]
    %v460 = vld [vmem:[#allocation5 + $0x158] sm:$0xff]
    %v461 = vld [vmem:[#allocation5 + $0x160] sm:$0xff]
    %v462 = vld [vmem:[#allocation5 + $0x168] sm:$0xff]
    %v463 = vld [vmem:[#allocation5 + $0x170] sm:$0xff]
    %v464 = vld [vmem:[#allocation5 + $0x178] sm:$0xff]
    %465 = vmatprep.subr.mxu0 %v463
    %466 = vmatpush1.msra.mxu0 %v462
    %467 = vmatprep.subr.mxu0 %v460
    %468 = vmatpush1.msra.mxu0 %v459
    %469 = vmatprep.subr.mxu0 %v457
    %470 = vmatpush1.msra.mxu0 %v456
    %471 = vmatprep.subr.mxu0 %v454
    %472 = vmatpush1.msra.mxu0 %v453
    %473 = vmatprep.subr.mxu0 %v451
    %474 = vmatpush1.msra.mxu0 %v450
    %475 = vmatprep.subr.mxu0 %v448
    %476 = vmatpush1.msra.mxu0 %v447
    %477 = vmatprep.subr.mxu0 %v445
    %478 = vmatpush1.msra.mxu0 %v444
    %479 = vmatprep.subr.mxu0 %v442
    %480 = vmatpush1.msra.mxu0 %v441
    %481 = vmatprep.subr.mxu0 %v439
    %482 = vmatpush1.msra.mxu0 %v438
    %483 = vmatprep.subr.mxu0 %v436
    %484 = vmatpush1.msra.mxu0 %v435
    %485 = vmatprep.subr.mxu0 %v433
    %486 = vmatpush1.msra.mxu0 %v432
    %487 = vmatprep.subr.mxu0 %v430
    %488 = vmatpush1.msra.mxu0 %v429
    %489 = vmatprep.subr.mxu0 %v427
    %490 = vmatpush1.msra.mxu0 %v426
    %491 = vmatprep.subr.mxu0 %v424
    %492 = vmatpush1.msra.mxu0 %v423
    %493 = vmatprep.subr.mxu0 %v421
    %494 = vmatpush1.msra.mxu0 %v420
    %495 = vmatprep.subr.mxu0 %v418
    %496 = vmatpush1.msra.mxu0 %v417
    %497 = vmatprep.subr.mxu0 0.0
    %498 = vmatpush2.msra.mxu0 0.0
    %499 = vmatprep.subr.mxu0 0.0
    %500 = vmatpush2.msra.mxu0 0.0
    %501 = vmatprep.subr.mxu0 0.0
    %502 = vmatpush2.msra.mxu0 0.0
    %503 = vmatprep.subr.mxu0 0.0
    %504 = vmatpush2.msra.mxu0 0.0
    %505 = vmatprep.subr.mxu0 0.0
    %506 = vmatpush2.msra.mxu0 0.0
    %507 = vmatprep.subr.mxu0 0.0
    %508 = vmatpush2.msra.mxu0 0.0
    %509 = vmatprep.subr.mxu0 0.0
    %510 = vmatpush2.msra.mxu0 0.0
    %511 = vmatprep.subr.mxu0 0.0
    %512 = vmatpush2.msra.mxu0 0.0
    %513 = vmatprep.subr.mxu0 0.0
    %514 = vmatpush2.msra.mxu0 0.0
    %515 = vmatprep.subr.mxu0 0.0
    %516 = vmatpush2.msra.mxu0 0.0
    %517 = vmatprep.subr.mxu0 0.0
    %518 = vmatpush2.msra.mxu0 0.0
    %519 = vmatprep.subr.mxu0 0.0
    %520 = vmatpush2.msra.mxu0 0.0
    %521 = vmatprep.subr.mxu0 0.0
    %522 = vmatpush2.msra.mxu0 0.0
    %523 = vmatprep.subr.mxu0 0.0
    %524 = vmatpush2.msra.mxu0 0.0
    %525 = vmatprep.subr.mxu0 0.0
    %526 = vmatpush2.msra.mxu0 0.0
    %527 = vmatprep.subr.mxu0 0.0
    %528 = vmatpush2.msra.mxu0 0.0
    %529 = vmatprep.mubr.f32.mxu0 0.0
    %530 = vmatmul.mubr.f32.gmra.mxu0 0.0
    %v531 = vpop.f32.mrf.mxu0
    %v532 = vadd.f32 0.0, %v531
    %v533 = vpop.f32.mrf.mxu0
    %v534 = vadd.f32 0.0, %v533
    %535 = vdwg.mxu0
    %536 = vmatprep.subr.mxu0 0.0
    %537 = vmatpush1.msra.mxu0 %v464
    %538 = vmatprep.subr.mxu0 0.0
    %539 = vmatpush1.msra.mxu0 %v461
    %540 = vmatprep.subr.mxu0 0.0
    %541 = vmatpush1.msra.mxu0 %v458
    %542 = vmatprep.subr.mxu0 0.0
    %543 = vmatpush1.msra.mxu0 %v455
    %544 = vmatprep.subr.mxu0 0.0
    %545 = vmatpush1.msra.mxu0 %v452
    %546 = vmatprep.subr.mxu0 0.0
    %547 = vmatpush1.msra.mxu0 %v449
    %548 = vmatprep.subr.mxu0 0.0
    %549 = vmatpush1.msra.mxu0 %v446
    %550 = vmatprep.subr.mxu0 0.0
    %551 = vmatpush1.msra.mxu0 %v443
    %552 = vmatprep.subr.mxu0 0.0
    %553 = vmatpush1.msra.mxu0 %v440
    %554 = vmatprep.subr.mxu0 0.0
    %555 = vmatpush1.msra.mxu0 %v437
    %556 = vmatprep.subr.mxu0 0.0
    %557 = vmatpush1.msra.mxu0 %v434
    %558 = vmatprep.subr.mxu0 0.0
    %559 = vmatpush1.msra.mxu0 %v431
    %560 = vmatprep.subr.mxu0 0.0
    %561 = vmatpush1.msra.mxu0 %v428
    %562 = vmatprep.subr.mxu0 0.0
    %563 = vmatpush1.msra.mxu0 %v425
    %564 = vmatprep.subr.mxu0 0.0
    %565 = vmatpush1.msra.mxu0 %v422
    %566 = vmatprep.subr.mxu0 0.0
    %567 = vmatpush1.msra.mxu0 %v419
    %568 = vmatprep.subr.mxu0 0.0
    %569 = vmatpush2.msra.mxu0 0.0
    %570 = vmatprep.subr.mxu0 0.0
    %571 = vmatpush2.msra.mxu0 0.0
    %572 = vmatprep.subr.mxu0 0.0
    %573 = vmatpush2.msra.mxu0 0.0
    %574 = vmatprep.subr.mxu0 0.0
    %575 = vmatpush2.msra.mxu0 0.0
    %576 = vmatprep.subr.mxu0 0.0
    %577 = vmatpush2.msra.mxu0 0.0
    %578 = vmatprep.subr.mxu0 0.0
    %579 = vmatpush2.msra.mxu0 0.0
    %580 = vmatprep.subr.mxu0 0.0
    %581 = vmatpush2.msra.mxu0 0.0
    %582 = vmatprep.subr.mxu0 0.0
    %583 = vmatpush2.msra.mxu0 0.0
    %584 = vmatprep.subr.mxu0 0.0
    %585 = vmatpush2.msra.mxu0 0.0
    %586 = vmatprep.subr.mxu0 0.0
    %587 = vmatpush2.msra.mxu0 0.0
    %588 = vmatprep.subr.mxu0 0.0
    %589 = vmatpush2.msra.mxu0 0.0
    %590 = vmatprep.subr.mxu0 0.0
    %591 = vmatpush2.msra.mxu0 0.0
    %592 = vmatprep.subr.mxu0 0.0
    %593 = vmatpush2.msra.mxu0 0.0
    %594 = vmatprep.subr.mxu0 0.0
    %595 = vmatpush2.msra.mxu0 0.0
    %596 = vmatprep.subr.mxu0 0.0
    %597 = vmatpush2.msra.mxu0 0.0
    %598 = vmatprep.subr.mxu0 0.0
    %599 = vmatpush2.msra.mxu0 0.0
    %600 = vmatprep.mubr.f32.mxu0 0.0
    %601 = vmatmul.mubr.f32.gmra.mxu0 0.0
    %v602 = vpop.f32.mrf.mxu0
    %v603 = vadd.f32 0.0, %v602
    %v604 = vpop.f32.mrf.mxu0
    %605 = vdwg.mxu0
    %v606 = vadd.f32 %v414, %v532
    %v607 = vxor.u32 %v606, 2147483648
    %v608 = vmul.f32 %v607, 1.442695
    %v609 = vpow.pop %v608
    %v610 = vadd.f32 %v609, 1.0
    %v611 = vrcp.pop %v610
    %v612 = vmul.f32 1.0, %v611
    %v613 = vadd.f32 %v415, %v534
    %v614 = vxor.u32 %v613, 2147483648
    %v615 = vmul.f32 %v614, 1.442695
    %v616 = vpow.pop %v615
    %v617 = vadd.f32 %v616, 1.0
    %v618 = vrcp.pop %v617
    %v619 = vmul.f32 1.0, %v618
    %v620 = vadd.f32 %v603, %v409
    %v621 = vmul.f32 %v612, %v620
    %v622 = vadd.f32 %v416, %v621
    %v623 = vtanh.pop %v622
    %v624 = vsub.f32 0.0, %v623
    %v625 = vmul.f32 %v619, %v624
    %v626 = vadd.f32 %v623, %v625
    %s627 = smul.u32 1, 3
    %s628 = smul.addr %s627, 8
    %s629 = scalar_lea.vmem [#allocation2], %s628
    %v630 = vld [vmem:[%s629] sm:$0xff]
    %v631 = vld [vmem:[%s629 + $0x8] sm:$0xff]
    %v632 = vld [vmem:[%s629 + $0x10] sm:$0xff]
    %633 = vmatprep.subr.mxu0 %v463
    %634 = vmatpush1.msra.mxu0 %v462
    %635 = vmatprep.subr.mxu0 %v460
    %636 = vmatpush1.msra.mxu0 %v459
    %637 = vmatprep.subr.mxu0 %v457
    %638 = vmatpush1.msra.mxu0 %v456
    %639 = vmatprep.subr.mxu0 %v454
    %640 = vmatpush1.msra.mxu0 %v453
    %641 = vmatprep.subr.mxu0 %v451
    %642 = vmatpush1.msra.mxu0 %v450
    %643 = vmatprep.subr.mxu0 %v448
    %644 = vmatpush1.msra.mxu0 %v447
    %645 = vmatprep.subr.mxu0 %v445
    %646 = vmatpush1.msra.mxu0 %v444
    %647 = vmatprep.subr.mxu0 %v442
    %648 = vmatpush1.msra.mxu0 %v441
    %649 = vmatprep.subr.mxu0 %v439
    %650 = vmatpush1.msra.mxu0 %v438
    %651 = vmatprep.subr.mxu0 %v436
    %652 = vmatpush1.msra.mxu0 %v435
    %653 = vmatprep.subr.mxu0 %v433
    %654 = vmatpush1.msra.mxu0 %v432
    %655 = vmatprep.subr.mxu0 %v430
    %656 = vmatpush1.msra.mxu0 %v429
    %657 = vmatprep.subr.mxu0 %v427
    %658 = vmatpush1.msra.mxu0 %v426
    %659 = vmatprep.subr.mxu0 %v424
    %660 = vmatpush1.msra.mxu0 %v423
    %661 = vmatprep.subr.mxu0 %v421
    %662 = vmatpush1.msra.mxu0 %v420
    %663 = vmatprep.subr.mxu0 %v418
    %664 = vmatpush1.msra.mxu0 %v417
    %665 = vmatprep.subr.mxu0 0.0
    %666 = vmatpush2.msra.mxu0 0.0
    %667 = vmatprep.subr.mxu0 0.0
    %668 = vmatpush2.msra.mxu0 0.0
    %669 = vmatprep.subr.mxu0 0.0
    %670 = vmatpush2.msra.mxu0 0.0
    %671 = vmatprep.subr.mxu0 0.0
    %672 = vmatpush2.msra.mxu0 0.0
    %673 = vmatprep.subr.mxu0 0.0
    %674 = vmatpush2.msra.mxu0 0.0
    %675 = vmatprep.subr.mxu0 0.0
    %676 = vmatpush2.msra.mxu0 0.0
    %677 = vmatprep.subr.mxu0 0.0
    %678 = vmatpush2.msra.mxu0 0.0
    %679 = vmatprep.subr.mxu0 0.0
    %680 = vmatpush2.msra.mxu0 0.0
    %681 = vmatprep.subr.mxu0 0.0
    %682 = vmatpush2.msra.mxu0 0.0
    %683 = vmatprep.subr.mxu0 0.0
    %684 = vmatpush2.msra.mxu0 0.0
    %685 = vmatprep.subr.mxu0 0.0
    %686 = vmatpush2.msra.mxu0 0.0
    %687 = vmatprep.subr.mxu0 0.0
    %688 = vmatpush2.msra.mxu0 0.0
    %689 = vmatprep.subr.mxu0 0.0
    %690 = vmatpush2.msra.mxu0 0.0
    %691 = vmatprep.subr.mxu0 0.0
    %692 = vmatpush2.msra.mxu0 0.0
    %693 = vmatprep.subr.mxu0 0.0
    %694 = vmatpush2.msra.mxu0 0.0
    %695 = vmatprep.subr.mxu0 0.0
    %696 = vmatpush2.msra.mxu0 0.0
    %697 = vmatprep.mubr.f32.mxu0 0.0
    %698 = vmatmul.mubr.f32.gmra.mxu0 %v626
    %v699 = vpop.f32.mrf.mxu0
    %v700 = vadd.f32 0.0, %v699
    %v701 = vpop.f32.mrf.mxu0
    %v702 = vadd.f32 0.0, %v701
    %703 = vdwg.mxu0
    %704 = vmatprep.subr.mxu0 0.0
    %705 = vmatpush1.msra.mxu0 %v464
    %706 = vmatprep.subr.mxu0 0.0
    %707 = vmatpush1.msra.mxu0 %v461
    %708 = vmatprep.subr.mxu0 0.0
    %709 = vmatpush1.msra.mxu0 %v458
    %710 = vmatprep.subr.mxu0 0.0
    %711 = vmatpush1.msra.mxu0 %v455
    %712 = vmatprep.subr.mxu0 0.0
    %713 = vmatpush1.msra.mxu0 %v452
    %714 = vmatprep.subr.mxu0 0.0
    %715 = vmatpush1.msra.mxu0 %v449
    %716 = vmatprep.subr.mxu0 0.0
    %717 = vmatpush1.msra.mxu0 %v446
    %718 = vmatprep.subr.mxu0 0.0
    %719 = vmatpush1.msra.mxu0 %v443
    %720 = vmatprep.subr.mxu0 0.0
    %721 = vmatpush1.msra.mxu0 %v440
    %722 = vmatprep.subr.mxu0 0.0
    %723 = vmatpush1.msra.mxu0 %v437
    %724 = vmatprep.subr.mxu0 0.0
    %725 = vmatpush1.msra.mxu0 %v434
    %726 = vmatprep.subr.mxu0 0.0
    %727 = vmatpush1.msra.mxu0 %v431
    %728 = vmatprep.subr.mxu0 0.0
    %729 = vmatpush1.msra.mxu0 %v428
    %730 = vmatprep.subr.mxu0 0.0
    %731 = vmatpush1.msra.mxu0 %v425
    %732 = vmatprep.subr.mxu0 0.0
    %733 = vmatpush1.msra.mxu0 %v422
    %734 = vmatprep.subr.mxu0 0.0
    %735 = vmatpush1.msra.mxu0 %v419
    %736 = vmatprep.subr.mxu0 0.0
    %737 = vmatpush2.msra.mxu0 0.0
    %738 = vmatprep.subr.mxu0 0.0
    %739 = vmatpush2.msra.mxu0 0.0
    %740 = vmatprep.subr.mxu0 0.0
    %741 = vmatpush2.msra.mxu0 0.0
    %742 = vmatprep.subr.mxu0 0.0
    %743 = vmatpush2.msra.mxu0 0.0
    %744 = vmatprep.subr.mxu0 0.0
    %745 = vmatpush2.msra.mxu0 0.0
    %746 = vmatprep.subr.mxu0 0.0
    %747 = vmatpush2.msra.mxu0 0.0
    %748 = vmatprep.subr.mxu0 0.0
    %749 = vmatpush2.msra.mxu0 0.0
    %750 = vmatprep.subr.mxu0 0.0
    %751 = vmatpush2.msra.mxu0 0.0
    %752 = vmatprep.subr.mxu0 0.0
    %753 = vmatpush2.msra.mxu0 0.0
    %754 = vmatprep.subr.mxu0 0.0
    %755 = vmatpush2.msra.mxu0 0.0
    %756 = vmatprep.subr.mxu0 0.0
    %757 = vmatpush2.msra.mxu0 0.0
    %758 = vmatprep.subr.mxu0 0.0
    %759 = vmatpush2.msra.mxu0 0.0
    %760 = vmatprep.subr.mxu0 0.0
    %761 = vmatpush2.msra.mxu0 0.0
    %762 = vmatprep.subr.mxu0 0.0
    %763 = vmatpush2.msra.mxu0 0.0
    %764 = vmatprep.subr.mxu0 0.0
    %765 = vmatpush2.msra.mxu0 0.0
    %766 = vmatprep.subr.mxu0 0.0
    %767 = vmatpush2.msra.mxu0 0.0
    %768 = vmatprep.mubr.f32.mxu0 0.0
    %769 = vmatmul.mubr.f32.gmra.mxu0 %v626
    %v770 = vpop.f32.mrf.mxu0
    %v771 = vadd.f32 0.0, %v770
    %v772 = vpop.f32.mrf.mxu0
    %773 = vdwg.mxu0
    %v774 = vadd.f32 %v630, %v700
    %v775 = vxor.u32 %v774, 2147483648
    %v776 = vmul.f32 %v775, 1.442695
    %v777 = vpow.pop %v776
    %v778 = vadd.f32 %v777, 1.0
    %v779 = vrcp.pop %v778
    %v780 = vmul.f32 1.0, %v779
    %v781 = vadd.f32 %v631, %v702
    %v782 = vxor.u32 %v781, 2147483648
    %v783 = vmul.f32 %v782, 1.442695
    %v784 = vpow.pop %v783
    %v785 = vadd.f32 %v784, 1.0
    %v786 = vrcp.pop %v785
    %v787 = vmul.f32 1.0, %v786
    %v788 = vadd.f32 %v771, %v409
    %v789 = vmul.f32 %v780, %v788
    %v790 = vadd.f32 %v632, %v789
    %v791 = vtanh.pop %v790
    %v792 = vsub.f32 %v626, %v791
    %v793 = vmul.f32 %v787, %v792
    %v794 = vadd.f32 %v791, %v793
    %s795 = smul.u32 2, 3
    %s796 = smul.addr %s795, 8
    %s797 = scalar_lea.vmem [#allocation2], %s796
    %v798 = vld [vmem:[%s797] sm:$0xff]
    %v799 = vld [vmem:[%s797 + $0x8] sm:$0xff]
    %v800 = vld [vmem:[%s797 + $0x10] sm:$0xff]
    %801 = vmatprep.subr.mxu0 %v463
    %802 = vmatpush1.msra.mxu0 %v462
    %803 = vmatprep.subr.mxu0 %v460
    %804 = vmatpush1.msra.mxu0 %v459
    %805 = vmatprep.subr.mxu0 %v457
    %806 = vmatpush1.msra.mxu0 %v456
    %807 = vmatprep.subr.mxu0 %v454
    %808 = vmatpush1.msra.mxu0 %v453
    %809 = vmatprep.subr.mxu0 %v451
    %810 = vmatpush1.msra.mxu0 %v450
    %811 = vmatprep.subr.mxu0 %v448
    %812 = vmatpush1.msra.mxu0 %v447
    %813 = vmatprep.subr.mxu0 %v445
    %814 = vmatpush1.msra.mxu0 %v444
    %815 = vmatprep.subr.mxu0 %v442
    %816 = vmatpush1.msra.mxu0 %v441
    %817 = vmatprep.subr.mxu0 %v439
    %818 = vmatpush1.msra.mxu0 %v438
    %819 = vmatprep.subr.mxu0 %v436
    %820 = vmatpush1.msra.mxu0 %v435
    %821 = vmatprep.subr.mxu0 %v433
    %822 = vmatpush1.msra.mxu0 %v432
    %823 = vmatprep.subr.mxu0 %v430
    %824 = vmatpush1.msra.mxu0 %v429
    %825 = vmatprep.subr.mxu0 %v427
    %826 = vmatpush1.msra.mxu0 %v426
    %827 = vmatprep.subr.mxu0 %v424
    %828 = vmatpush1.msra.mxu0 %v423
    %829 = vmatprep.subr.mxu0 %v421
    %830 = vmatpush1.msra.mxu0 %v420
    %831 = vmatprep.subr.mxu0 %v418
    %832 = vmatpush1.msra.mxu0 %v417
    %833 = vmatprep.subr.mxu0 0.0
    %834 = vmatpush2.msra.mxu0 0.0
    %835 = vmatprep.subr.mxu0 0.0
    %836 = vmatpush2.msra.mxu0 0.0
    %837 = vmatprep.subr.mxu0 0.0
    %838 = vmatpush2.msra.mxu0 0.0
    %839 = vmatprep.subr.mxu0 0.0
    %840 = vmatpush2.msra.mxu0 0.0
    %841 = vmatprep.subr.mxu0 0.0
    %842 = vmatpush2.msra.mxu0 0.0
    %843 = vmatprep.subr.mxu0 0.0
    %844 = vmatpush2.msra.mxu0 0.0
    %845 = vmatprep.subr.mxu0 0.0
    %846 = vmatpush2.msra.mxu0 0.0
    %847 = vmatprep.subr.mxu0 0.0
    %848 = vmatpush2.msra.mxu0 0.0
    %849 = vmatprep.subr.mxu0 0.0
    %850 = vmatpush2.msra.mxu0 0.0
    %851 = vmatprep.subr.mxu0 0.0
    %852 = vmatpush2.msra.mxu0 0.0
    %853 = vmatprep.subr.mxu0 0.0
    %854 = vmatpush2.msra.mxu0 0.0
    %855 = vmatprep.subr.mxu0 0.0
    %856 = vmatpush2.msra.mxu0 0.0
    %857 = vmatprep.subr.mxu0 0.0
    %858 = vmatpush2.msra.mxu0 0.0
    %859 = vmatprep.subr.mxu0 0.0
    %860 = vmatpush2.msra.mxu0 0.0
    %861 = vmatprep.subr.mxu0 0.0
    %862 = vmatpush2.msra.mxu0 0.0
    %863 = vmatprep.subr.mxu0 0.0
    %864 = vmatpush2.msra.mxu0 0.0
    %865 = vmatprep.mubr.f32.mxu0 0.0
    %866 = vmatmul.mubr.f32.gmra.mxu0 %v794
    %v867 = vpop.f32.mrf.mxu0
    %v868 = vadd.f32 0.0, %v867
    %v869 = vpop.f32.mrf.mxu0
    %v870 = vadd.f32 0.0, %v869
    %871 = vdwg.mxu0
    %872 = vmatprep.subr.mxu0 0.0
    %873 = vmatpush1.msra.mxu0 %v464
    %874 = vmatprep.subr.mxu0 0.0
    %875 = vmatpush1.msra.mxu0 %v461
    %876 = vmatprep.subr.mxu0 0.0
    %877 = vmatpush1.msra.mxu0 %v458
    %878 = vmatprep.subr.mxu0 0.0
    %879 = vmatpush1.msra.mxu0 %v455
    %880 = vmatprep.subr.mxu0 0.0
    %881 = vmatpush1.msra.mxu0 %v452
    %882 = vmatprep.subr.mxu0 0.0
    %883 = vmatpush1.msra.mxu0 %v449
    %884 = vmatprep.subr.mxu0 0.0
    %885 = vmatpush1.msra.mxu0 %v446
    %886 = vmatprep.subr.mxu0 0.0
    %887 = vmatpush1.msra.mxu0 %v443
    %888 = vmatprep.subr.mxu0 0.0
    %889 = vmatpush1.msra.mxu0 %v440
    %890 = vmatprep.subr.mxu0 0.0
    %891 = vmatpush1.msra.mxu0 %v437
    %892 = vmatprep.subr.mxu0 0.0
    %893 = vmatpush1.msra.mxu0 %v434
    %894 = vmatprep.subr.mxu0 0.0
    %895 = vmatpush1.msra.mxu0 %v431
    %896 = vmatprep.subr.mxu0 0.0
    %897 = vmatpush1.msra.mxu0 %v428
    %898 = vmatprep.subr.mxu0 0.0
    %899 = vmatpush1.msra.mxu0 %v425
    %900 = vmatprep.subr.mxu0 0.0
    %901 = vmatpush1.msra.mxu0 %v422
    %902 = vmatprep.subr.mxu0 0.0
    %903 = vmatpush1.msra.mxu0 %v419
    %904 = vmatprep.subr.mxu0 0.0
    %905 = vmatpush2.msra.mxu0 0.0
    %906 = vmatprep.subr.mxu0 0.0
    %907 = vmatpush2.msra.mxu0 0.0
    %908 = vmatprep.subr.mxu0 0.0
    %909 = vmatpush2.msra.mxu0 0.0
    %910 = vmatprep.subr.mxu0 0.0
    %911 = vmatpush2.msra.mxu0 0.0
    %912 = vmatprep.subr.mxu0 0.0
    %913 = vmatpush2.msra.mxu0 0.0
    %914 = vmatprep.subr.mxu0 0.0
    %915 = vmatpush2.msra.mxu0 0.0
    %916 = vmatprep.subr.mxu0 0.0
    %917 = vmatpush2.msra.mxu0 0.0
    %918 = vmatprep.subr.mxu0 0.0
    %919 = vmatpush2.msra.mxu0 0.0
    %920 = vmatprep.subr.mxu0 0.0
    %921 = vmatpush2.msra.mxu0 0.0
    %922 = vmatprep.subr.mxu0 0.0
    %923 = vmatpush2.msra.mxu0 0.0
    %924 = vmatprep.subr.mxu0 0.0
    %925 = vmatpush2.msra.mxu0 0.0
    %926 = vmatprep.subr.mxu0 0.0
    %927 = vmatpush2.msra.mxu0 0.0
    %928 = vmatprep.subr.mxu0 0.0
    %929 = vmatpush2.msra.mxu0 0.0
    %930 = vmatprep.subr.mxu0 0.0
    %931 = vmatpush2.msra.mxu0 0.0
    %932 = vmatprep.subr.mxu0 0.0
    %933 = vmatpush2.msra.mxu0 0.0
    %934 = vmatprep.subr.mxu0 0.0
    %935 = vmatpush2.msra.mxu0 0.0
    %936 = vmatprep.mubr.f32.mxu0 0.0
    %937 = vmatmul.mubr.f32.gmra.mxu0 %v794
    %v938 = vpop.f32.mrf.mxu0
    %v939 = vadd.f32 0.0, %v938
    %v940 = vpop.f32.mrf.mxu0
    %941 = vdwg.mxu0
    %v942 = vadd.f32 %v798, %v868
    %v943 = vxor.u32 %v942, 2147483648
    %v944 = vmul.f32 %v943, 1.442695
    %v945 = vpow.pop %v944
    %v946 = vadd.f32 %v945, 1.0
    %v947 = vrcp.pop %v946
    %v948 = vmul.f32 1.0, %v947
    %v949 = vadd.f32 %v799, %v870
    %v950 = vxor.u32 %v949, 2147483648
    %v951 = vmul.f32 %v950, 1.442695
    %v952 = vpow.pop %v951
    %v953 = vadd.f32 %v952, 1.0
    %v954 = vrcp.pop %v953
    %v955 = vmul.f32 1.0, %v954
    %v956 = vadd.f32 %v939, %v409
    %v957 = vmul.f32 %v948, %v956
    %v958 = vadd.f32 %v800, %v957
    %v959 = vtanh.pop %v958
    %v960 = vsub.f32 %v794, %v959
    %v961 = vmul.f32 %v955, %v960
    %v962 = vadd.f32 %v959, %v961
    %s963 = smul.u32 3, 3
    %s964 = smul.addr %s963, 8
    %s965 = scalar_lea.vmem [#allocation2], %s964
    %v966 = vld [vmem:[%s965] sm:$0xff]
    %v967 = vld [vmem:[%s965 + $0x8] sm:$0xff]
    %v968 = vld [vmem:[%s965 + $0x10] sm:$0xff]
    %969 = vmatprep.subr.mxu0 %v463
    %970 = vmatpush1.msra.mxu0 %v462
    %971 = vmatprep.subr.mxu0 %v460
    %972 = vmatpush1.msra.mxu0 %v459
    %973 = vmatprep.subr.mxu0 %v457
    %974 = vmatpush1.msra.mxu0 %v456
    %975 = vmatprep.subr.mxu0 %v454
    %976 = vmatpush1.msra.mxu0 %v453
    %977 = vmatprep.subr.mxu0 %v451
    %978 = vmatpush1.msra.mxu0 %v450
    %979 = vmatprep.subr.mxu0 %v448
    %980 = vmatpush1.msra.mxu0 %v447
    %981 = vmatprep.subr.mxu0 %v445
    %982 = vmatpush1.msra.mxu0 %v444
    %983 = vmatprep.subr.mxu0 %v442
    %984 = vmatpush1.msra.mxu0 %v441
    %985 = vmatprep.subr.mxu0 %v439
    %986 = vmatpush1.msra.mxu0 %v438
    %987 = vmatprep.subr.mxu0 %v436
    %988 = vmatpush1.msra.mxu0 %v435
    %989 = vmatprep.subr.mxu0 %v433
    %990 = vmatpush1.msra.mxu0 %v432
    %991 = vmatprep.subr.mxu0 %v430
    %992 = vmatpush1.msra.mxu0 %v429
    %993 = vmatprep.subr.mxu0 %v427
    %994 = vmatpush1.msra.mxu0 %v426
    %995 = vmatprep.subr.mxu0 %v424
    %996 = vmatpush1.msra.mxu0 %v423
    %997 = vmatprep.subr.mxu0 %v421
    %998 = vmatpush1.msra.mxu0 %v420
    %999 = vmatprep.subr.mxu0 %v418
    %1000 = vmatpush1.msra.mxu0 %v417
    %1001 = vmatprep.subr.mxu0 0.0
    %1002 = vmatpush2.msra.mxu0 0.0
    %1003 = vmatprep.subr.mxu0 0.0
    %1004 = vmatpush2.msra.mxu0 0.0
    %1005 = vmatprep.subr.mxu0 0.0
    %1006 = vmatpush2.msra.mxu0 0.0
    %1007 = vmatprep.subr.mxu0 0.0
    %1008 = vmatpush2.msra.mxu0 0.0
    %1009 = vmatprep.subr.mxu0 0.0
    %1010 = vmatpush2.msra.mxu0 0.0
    %1011 = vmatprep.subr.mxu0 0.0
    %1012 = vmatpush2.msra.mxu0 0.0
    %1013 = vmatprep.subr.mxu0 0.0
    %1014 = vmatpush2.msra.mxu0 0.0
    %1015 = vmatprep.subr.mxu0 0.0
    %1016 = vmatpush2.msra.mxu0 0.0
    %1017 = vmatprep.subr.mxu0 0.0
    %1018 = vmatpush2.msra.mxu0 0.0
    %1019 = vmatprep.subr.mxu0 0.0
    %1020 = vmatpush2.msra.mxu0 0.0
    %1021 = vmatprep.subr.mxu0 0.0
    %1022 = vmatpush2.msra.mxu0 0.0
    %1023 = vmatprep.subr.mxu0 0.0
    %1024 = vmatpush2.msra.mxu0 0.0
    %1025 = vmatprep.subr.mxu0 0.0
    %1026 = vmatpush2.msra.mxu0 0.0
    %1027 = vmatprep.subr.mxu0 0.0
    %1028 = vmatpush2.msra.mxu0 0.0
    %1029 = vmatprep.subr.mxu0 0.0
    %1030 = vmatpush2.msra.mxu0 0.0
    %1031 = vmatprep.subr.mxu0 0.0
    %1032 = vmatpush2.msra.mxu0 0.0
    %1033 = vmatprep.mubr.f32.mxu0 0.0
    %1034 = vmatmul.mubr.f32.gmra.mxu0 %v962
    %v1035 = vpop.f32.mrf.mxu0
    %v1036 = vadd.f32 0.0, %v1035
    %v1037 = vpop.f32.mrf.mxu0
    %v1038 = vadd.f32 0.0, %v1037
    %1039 = vdwg.mxu0
    %1040 = vmatprep.subr.mxu0 0.0
    %1041 = vmatpush1.msra.mxu0 %v464
    %1042 = vmatprep.subr.mxu0 0.0
    %1043 = vmatpush1.msra.mxu0 %v461
    %1044 = vmatprep.subr.mxu0 0.0
    %1045 = vmatpush1.msra.mxu0 %v458
    %1046 = vmatprep.subr.mxu0 0.0
    %1047 = vmatpush1.msra.mxu0 %v455
    %1048 = vmatprep.subr.mxu0 0.0
    %1049 = vmatpush1.msra.mxu0 %v452
    %1050 = vmatprep.subr.mxu0 0.0
    %1051 = vmatpush1.msra.mxu0 %v449
    %1052 = vmatprep.subr.mxu0 0.0
    %1053 = vmatpush1.msra.mxu0 %v446
    %1054 = vmatprep.subr.mxu0 0.0
    %1055 = vmatpush1.msra.mxu0 %v443
    %1056 = vmatprep.subr.mxu0 0.0
    %1057 = vmatpush1.msra.mxu0 %v440
    %1058 = vmatprep.subr.mxu0 0.0
    %1059 = vmatpush1.msra.mxu0 %v437
    %1060 = vmatprep.subr.mxu0 0.0
    %1061 = vmatpush1.msra.mxu0 %v434
    %1062 = vmatprep.subr.mxu0 0.0
    %1063 = vmatpush1.msra.mxu0 %v431
    %1064 = vmatprep.subr.mxu0 0.0
    %1065 = vmatpush1.msra.mxu0 %v428
    %1066 = vmatprep.subr.mxu0 0.0
    %1067 = vmatpush1.msra.mxu0 %v425
    %1068 = vmatprep.subr.mxu0 0.0
    %1069 = vmatpush1.msra.mxu0 %v422
    %1070 = vmatprep.subr.mxu0 0.0
    %1071 = vmatpush1.msra.mxu0 %v419
    %1072 = vmatprep.subr.mxu0 0.0
    %1073 = vmatpush2.msra.mxu0 0.0
    %1074 = vmatprep.subr.mxu0 0.0
    %1075 = vmatpush2.msra.mxu0 0.0
    %1076 = vmatprep.subr.mxu0 0.0
    %1077 = vmatpush2.msra.mxu0 0.0
    %1078 = vmatprep.subr.mxu0 0.0
    %1079 = vmatpush2.msra.mxu0 0.0
    %1080 = vmatprep.subr.mxu0 0.0
    %1081 = vmatpush2.msra.mxu0 0.0
    %1082 = vmatprep.subr.mxu0 0.0
    %1083 = vmatpush2.msra.mxu0 0.0
    %1084 = vmatprep.subr.mxu0 0.0
    %1085 = vmatpush2.msra.mxu0 0.0
    %1086 = vmatprep.subr.mxu0 0.0
    %1087 = vmatpush2.msra.mxu0 0.0
    %1088 = vmatprep.subr.mxu0 0.0
    %1089 = vmatpush2.msra.mxu0 0.0
    %1090 = vmatprep.subr.mxu0 0.0
    %1091 = vmatpush2.msra.mxu0 0.0
    %1092 = vmatprep.subr.mxu0 0.0
    %1093 = vmatpush2.msra.mxu0 0.0
    %1094 = vmatprep.subr.mxu0 0.0
    %1095 = vmatpush2.msra.mxu0 0.0
    %1096 = vmatprep.subr.mxu0 0.0
    %1097 = vmatpush2.msra.mxu0 0.0
    %1098 = vmatprep.subr.mxu0 0.0
    %1099 = vmatpush2.msra.mxu0 0.0
    %1100 = vmatprep.subr.mxu0 0.0
    %1101 = vmatpush2.msra.mxu0 0.0
    %1102 = vmatprep.subr.mxu0 0.0
    %1103 = vmatpush2.msra.mxu0 0.0
    %1104 = vmatprep.mubr.f32.mxu0 0.0
    %1105 = vmatmul.mubr.f32.gmra.mxu0 %v962
    %v1106 = vpop.f32.mrf.mxu0
    %v1107 = vadd.f32 0.0, %v1106
    %v1108 = vpop.f32.mrf.mxu0
    %1109 = vdwg.mxu0
    %v1110 = vadd.f32 %v966, %v1036
    %v1111 = vxor.u32 %v1110, 2147483648
    %v1112 = vmul.f32 %v1111, 1.442695
    %v1113 = vpow.pop %v1112
    %v1114 = vadd.f32 %v1113, 1.0
    %v1115 = vrcp.pop %v1114
    %v1116 = vmul.f32 1.0, %v1115
    %v1117 = vadd.f32 %v967, %v1038
    %v1118 = vxor.u32 %v1117, 2147483648
    %v1119 = vmul.f32 %v1118, 1.442695
    %v1120 = vpow.pop %v1119
    %v1121 = vadd.f32 %v1120, 1.0
    %v1122 = vrcp.pop %v1121
    %v1123 = vmul.f32 1.0, %v1122
    %v1124 = vadd.f32 %v1107, %v409
    %v1125 = vmul.f32 %v1116, %v1124
    %v1126 = vadd.f32 %v968, %v1125
    %v1127 = vtanh.pop %v1126
    %v1128 = vsub.f32 %v962, %v1127
    %v1129 = vmul.f32 %v1123, %v1128
    %v1130 = vadd.f32 %v1127, %v1129
    %s1131 = smul.u32 4, 3
    %s1132 = smul.addr %s1131, 8
    %s1133 = scalar_lea.vmem [#allocation2], %s1132
    %v1134 = vld [vmem:[%s1133] sm:$0xff]
    %v1135 = vld [vmem:[%s1133 + $0x8] sm:$0xff]
    %v1136 = vld [vmem:[%s1133 + $0x10] sm:$0xff]
    %1137 = vmatprep.subr.mxu0 %v463
    %1138 = vmatpush1.msra.mxu0 %v462
    %1139 = vmatprep.subr.mxu0 %v460
    %1140 = vmatpush1.msra.mxu0 %v459
    %1141 = vmatprep.subr.mxu0 %v457
    %1142 = vmatpush1.msra.mxu0 %v456
    %1143 = vmatprep.subr.mxu0 %v454
    %1144 = vmatpush1.msra.mxu0 %v453
    %1145 = vmatprep.subr.mxu0 %v451
    %1146 = vmatpush1.msra.mxu0 %v450
    %1147 = vmatprep.subr.mxu0 %v448
    %1148 = vmatpush1.msra.mxu0 %v447
    %1149 = vmatprep.subr.mxu0 %v445
    %1150 = vmatpush1.msra.mxu0 %v444
    %1151 = vmatprep.subr.mxu0 %v442
    %1152 = vmatpush1.msra.mxu0 %v441
    %1153 = vmatprep.subr.mxu0 %v439
    %1154 = vmatpush1.msra.mxu0 %v438
    %1155 = vmatprep.subr.mxu0 %v436
    %1156 = vmatpush1.msra.mxu0 %v435
    %1157 = vmatprep.subr.mxu0 %v433
    %1158 = vmatpush1.msra.mxu0 %v432
    %1159 = vmatprep.subr.mxu0 %v430
    %1160 = vmatpush1.msra.mxu0 %v429
    %1161 = vmatprep.subr.mxu0 %v427
    %1162 = vmatpush1.msra.mxu0 %v426
    %1163 = vmatprep.subr.mxu0 %v424
    %1164 = vmatpush1.msra.mxu0 %v423
    %1165 = vmatprep.subr.mxu0 %v421
    %1166 = vmatpush1.msra.mxu0 %v420
    %1167 = vmatprep.subr.mxu0 %v418
    %1168 = vmatpush1.msra.mxu0 %v417
    %1169 = vmatprep.subr.mxu0 0.0
    %1170 = vmatpush2.msra.mxu0 0.0
    %1171 = vmatprep.subr.mxu0 0.0
    %1172 = vmatpush2.msra.mxu0 0.0
    %1173 = vmatprep.subr.mxu0 0.0
    %1174 = vmatpush2.msra.mxu0 0.0
    %1175 = vmatprep.subr.mxu0 0.0
    %1176 = vmatpush2.msra.mxu0 0.0
    %1177 = vmatprep.subr.mxu0 0.0
    %1178 = vmatpush2.msra.mxu0 0.0
    %1179 = vmatprep.subr.mxu0 0.0
    %1180 = vmatpush2.msra.mxu0 0.0
    %1181 = vmatprep.subr.mxu0 0.0
    %1182 = vmatpush2.msra.mxu0 0.0
    %1183 = vmatprep.subr.mxu0 0.0
    %1184 = vmatpush2.msra.mxu0 0.0
    %1185 = vmatprep.subr.mxu0 0.0
    %1186 = vmatpush2.msra.mxu0 0.0
    %1187 = vmatprep.subr.mxu0 0.0
    %1188 = vmatpush2.msra.mxu0 0.0
    %1189 = vmatprep.subr.mxu0 0.0
    %1190 = vmatpush2.msra.mxu0 0.0
    %1191 = vmatprep.subr.mxu0 0.0
    %1192 = vmatpush2.msra.mxu0 0.0
    %1193 = vmatprep.subr.mxu0 0.0
    %1194 = vmatpush2.msra.mxu0 0.0
    %1195 = vmatprep.subr.mxu0 0.0
    %1196 = vmatpush2.msra.mxu0 0.0
    %1197 = vmatprep.subr.mxu0 0.0
    %1198 = vmatpush2.msra.mxu0 0.0
    %1199 = vmatprep.subr.mxu0 0.0
    %1200 = vmatpush2.msra.mxu0 0.0
    %1201 = vmatprep.mubr.f32.mxu0 0.0
    %1202 = vmatmul.mubr.f32.gmra.mxu0 %v1130
    %v1203 = vpop.f32.mrf.mxu0
    %v1204 = vadd.f32 0.0, %v1203
    %v1205 = vpop.f32.mrf.mxu0
    %v1206 = vadd.f32 0.0, %v1205
    %1207 = vdwg.mxu0
    %1208 = vmatprep.subr.mxu0 0.0
    %1209 = vmatpush1.msra.mxu0 %v464
    %1210 = vmatprep.subr.mxu0 0.0
    %1211 = vmatpush1.msra.mxu0 %v461
    %1212 = vmatprep.subr.mxu0 0.0
    %1213 = vmatpush1.msra.mxu0 %v458
    %1214 = vmatprep.subr.mxu0 0.0
    %1215 = vmatpush1.msra.mxu0 %v455
    %1216 = vmatprep.subr.mxu0 0.0
    %1217 = vmatpush1.msra.mxu0 %v452
    %1218 = vmatprep.subr.mxu0 0.0
    %1219 = vmatpush1.msra.mxu0 %v449
    %1220 = vmatprep.subr.mxu0 0.0
    %1221 = vmatpush1.msra.mxu0 %v446
    %1222 = vmatprep.subr.mxu0 0.0
    %1223 = vmatpush1.msra.mxu0 %v443
    %1224 = vmatprep.subr.mxu0 0.0
    %1225 = vmatpush1.msra.mxu0 %v440
    %1226 = vmatprep.subr.mxu0 0.0
    %1227 = vmatpush1.msra.mxu0 %v437
    %1228 = vmatprep.subr.mxu0 0.0
    %1229 = vmatpush1.msra.mxu0 %v434
    %1230 = vmatprep.subr.mxu0 0.0
    %1231 = vmatpush1.msra.mxu0 %v431
    %1232 = vmatprep.subr.mxu0 0.0
    %1233 = vmatpush1.msra.mxu0 %v428
    %1234 = vmatprep.subr.mxu0 0.0
    %1235 = vmatpush1.msra.mxu0 %v425
    %1236 = vmatprep.subr.mxu0 0.0
    %1237 = vmatpush1.msra.mxu0 %v422
    %1238 = vmatprep.subr.mxu0 0.0
    %1239 = vmatpush1.msra.mxu0 %v419
    %1240 = vmatprep.subr.mxu0 0.0
    %1241 = vmatpush2.msra.mxu0 0.0
    %1242 = vmatprep.subr.mxu0 0.0
    %1243 = vmatpush2.msra.mxu0 0.0
    %1244 = vmatprep.subr.mxu0 0.0
    %1245 = vmatpush2.msra.mxu0 0.0
    %1246 = vmatprep.subr.mxu0 0.0
    %1247 = vmatpush2.msra.mxu0 0.0
    %1248 = vmatprep.subr.mxu0 0.0
    %1249 = vmatpush2.msra.mxu0 0.0
    %1250 = vmatprep.subr.mxu0 0.0
    %1251 = vmatpush2.msra.mxu0 0.0
    %1252 = vmatprep.subr.mxu0 0.0
    %1253 = vmatpush2.msra.mxu0 0.0
    %1254 = vmatprep.subr.mxu0 0.0
    %1255 = vmatpush2.msra.mxu0 0.0
    %1256 = vmatprep.subr.mxu0 0.0
    %1257 = vmatpush2.msra.mxu0 0.0
    %1258 = vmatprep.subr.mxu0 0.0
    %1259 = vmatpush2.msra.mxu0 0.0
    %1260 = vmatprep.subr.mxu0 0.0
    %1261 = vmatpush2.msra.mxu0 0.0
    %1262 = vmatprep.subr.mxu0 0.0
    %1263 = vmatpush2.msra.mxu0 0.0
    %1264 = vmatprep.subr.mxu0 0.0
    %1265 = vmatpush2.msra.mxu0 0.0
    %1266 = vmatprep.subr.mxu0 0.0
    %1267 = vmatpush2.msra.mxu0 0.0
    %1268 = vmatprep.subr.mxu0 0.0
    %1269 = vmatpush2.msra.mxu0 0.0
    %1270 = vmatprep.subr.mxu0 0.0
    %1271 = vmatpush2.msra.mxu0 0.0
    %1272 = vmatprep.mubr.f32.mxu0 0.0
    %1273 = vmatmul.mubr.f32.gmra.mxu0 %v1130
    %v1274 = vpop.f32.mrf.mxu0
    %v1275 = vadd.f32 0.0, %v1274
    %v1276 = vpop.f32.mrf.mxu0
    %1277 = vdwg.mxu0
    %v1278 = vadd.f32 %v1134, %v1204
    %v1279 = vxor.u32 %v1278, 2147483648
    %v1280 = vmul.f32 %v1279, 1.442695
    %v1281 = vpow.pop %v1280
    %v1282 = vadd.f32 %v1281, 1.0
    %v1283 = vrcp.pop %v1282
    %v1284 = vmul.f32 1.0, %v1283
    %v1285 = vadd.f32 %v1135, %v1206
    %v1286 = vxor.u32 %v1285, 2147483648
    %v1287 = vmul.f32 %v1286, 1.442695
    %v1288 = vpow.pop %v1287
    %v1289 = vadd.f32 %v1288, 1.0
    %v1290 = vrcp.pop %v1289
    %v1291 = vmul.f32 1.0, %v1290
    %v1292 = vadd.f32 %v1275, %v409
    %v1293 = vmul.f32 %v1284, %v1292
    %v1294 = vadd.f32 %v1136, %v1293
    %v1295 = vtanh.pop %v1294
    %v1296 = vsub.f32 %v1130, %v1295
    %v1297 = vmul.f32 %v1291, %v1296
    %v1298 = vadd.f32 %v1295, %v1297
    %s1299 = smul.u32 5, 3
    %s1300 = smul.addr %s1299, 8
    %s1301 = scalar_lea.vmem [#allocation2], %s1300
    %v1302 = vld [vmem:[%s1301] sm:$0xff]
    %v1303 = vld [vmem:[%s1301 + $0x8] sm:$0xff]
    %v1304 = vld [vmem:[%s1301 + $0x10] sm:$0xff]
    %1305 = vmatprep.subr.mxu0 %v463
    %1306 = vmatpush1.msra.mxu0 %v462
    %1307 = vmatprep.subr.mxu0 %v460
    %1308 = vmatpush1.msra.mxu0 %v459
    %1309 = vmatprep.subr.mxu0 %v457
    %1310 = vmatpush1.msra.mxu0 %v456
    %1311 = vmatprep.subr.mxu0 %v454
    %1312 = vmatpush1.msra.mxu0 %v453
    %1313 = vmatprep.subr.mxu0 %v451
    %1314 = vmatpush1.msra.mxu0 %v450
    %1315 = vmatprep.subr.mxu0 %v448
    %1316 = vmatpush1.msra.mxu0 %v447
    %1317 = vmatprep.subr.mxu0 %v445
    %1318 = vmatpush1.msra.mxu0 %v444
    %1319 = vmatprep.subr.mxu0 %v442
    %1320 = vmatpush1.msra.mxu0 %v441
    %1321 = vmatprep.subr.mxu0 %v439
    %1322 = vmatpush1.msra.mxu0 %v438
    %1323 = vmatprep.subr.mxu0 %v436
    %1324 = vmatpush1.msra.mxu0 %v435
    %1325 = vmatprep.subr.mxu0 %v433
    %1326 = vmatpush1.msra.mxu0 %v432
    %1327 = vmatprep.subr.mxu0 %v430
    %1328 = vmatpush1.msra.mxu0 %v429
    %1329 = vmatprep.subr.mxu0 %v427
    %1330 = vmatpush1.msra.mxu0 %v426
    %1331 = vmatprep.subr.mxu0 %v424
    %1332 = vmatpush1.msra.mxu0 %v423
    %1333 = vmatprep.subr.mxu0 %v421
    %1334 = vmatpush1.msra.mxu0 %v420
    %1335 = vmatprep.subr.mxu0 %v418
    %1336 = vmatpush1.msra.mxu0 %v417
    %1337 = vmatprep.subr.mxu0 0.0
    %1338 = vmatpush2.msra.mxu0 0.0
    %1339 = vmatprep.subr.mxu0 0.0
    %1340 = vmatpush2.msra.mxu0 0.0
    %1341 = vmatprep.subr.mxu0 0.0
    %1342 = vmatpush2.msra.mxu0 0.0
    %1343 = vmatprep.subr.mxu0 0.0
    %1344 = vmatpush2.msra.mxu0 0.0
    %1345 = vmatprep.subr.mxu0 0.0
    %1346 = vmatpush2.msra.mxu0 0.0
    %1347 = vmatprep.subr.mxu0 0.0
    %1348 = vmatpush2.msra.mxu0 0.0
    %1349 = vmatprep.subr.mxu0 0.0
    %1350 = vmatpush2.msra.mxu0 0.0
    %1351 = vmatprep.subr.mxu0 0.0
    %1352 = vmatpush2.msra.mxu0 0.0
    %1353 = vmatprep.subr.mxu0 0.0
    %1354 = vmatpush2.msra.mxu0 0.0
    %1355 = vmatprep.subr.mxu0 0.0
    %1356 = vmatpush2.msra.mxu0 0.0
    %1357 = vmatprep.subr.mxu0 0.0
    %1358 = vmatpush2.msra.mxu0 0.0
    %1359 = vmatprep.subr.mxu0 0.0
    %1360 = vmatpush2.msra.mxu0 0.0
    %1361 = vmatprep.subr.mxu0 0.0
    %1362 = vmatpush2.msra.mxu0 0.0
    %1363 = vmatprep.subr.mxu0 0.0
    %1364 = vmatpush2.msra.mxu0 0.0
    %1365 = vmatprep.subr.mxu0 0.0
    %1366 = vmatpush2.msra.mxu0 0.0
    %1367 = vmatprep.subr.mxu0 0.0
    %1368 = vmatpush2.msra.mxu0 0.0
    %1369 = vmatprep.mubr.f32.mxu0 0.0
    %1370 = vmatmul.mubr.f32.gmra.mxu0 %v1298
    %v1371 = vpop.f32.mrf.mxu0
    %v1372 = vadd.f32 0.0, %v1371
    %v1373 = vpop.f32.mrf.mxu0
    %v1374 = vadd.f32 0.0, %v1373
    %1375 = vdwg.mxu0
    %1376 = vmatprep.subr.mxu0 0.0
    %1377 = vmatpush1.msra.mxu0 %v464
    %1378 = vmatprep.subr.mxu0 0.0
    %1379 = vmatpush1.msra.mxu0 %v461
    %1380 = vmatprep.subr.mxu0 0.0
    %1381 = vmatpush1.msra.mxu0 %v458
    %1382 = vmatprep.subr.mxu0 0.0
    %1383 = vmatpush1.msra.mxu0 %v455
    %1384 = vmatprep.subr.mxu0 0.0
    %1385 = vmatpush1.msra.mxu0 %v452
    %1386 = vmatprep.subr.mxu0 0.0
    %1387 = vmatpush1.msra.mxu0 %v449
    %1388 = vmatprep.subr.mxu0 0.0
    %1389 = vmatpush1.msra.mxu0 %v446
    %1390 = vmatprep.subr.mxu0 0.0
    %1391 = vmatpush1.msra.mxu0 %v443
    %1392 = vmatprep.subr.mxu0 0.0
    %1393 = vmatpush1.msra.mxu0 %v440
    %1394 = vmatprep.subr.mxu0 0.0
    %1395 = vmatpush1.msra.mxu0 %v437
    %1396 = vmatprep.subr.mxu0 0.0
    %1397 = vmatpush1.msra.mxu0 %v434
    %1398 = vmatprep.subr.mxu0 0.0
    %1399 = vmatpush1.msra.mxu0 %v431
    %1400 = vmatprep.subr.mxu0 0.0
    %1401 = vmatpush1.msra.mxu0 %v428
    %1402 = vmatprep.subr.mxu0 0.0
    %1403 = vmatpush1.msra.mxu0 %v425
    %1404 = vmatprep.subr.mxu0 0.0
    %1405 = vmatpush1.msra.mxu0 %v422
    %1406 = vmatprep.subr.mxu0 0.0
    %1407 = vmatpush1.msra.mxu0 %v419
    %1408 = vmatprep.subr.mxu0 0.0
    %1409 = vmatpush2.msra.mxu0 0.0
    %1410 = vmatprep.subr.mxu0 0.0
    %1411 = vmatpush2.msra.mxu0 0.0
    %1412 = vmatprep.subr.mxu0 0.0
    %1413 = vmatpush2.msra.mxu0 0.0
    %1414 = vmatprep.subr.mxu0 0.0
    %1415 = vmatpush2.msra.mxu0 0.0
    %1416 = vmatprep.subr.mxu0 0.0
    %1417 = vmatpush2.msra.mxu0 0.0
    %1418 = vmatprep.subr.mxu0 0.0
    %1419 = vmatpush2.msra.mxu0 0.0
    %1420 = vmatprep.subr.mxu0 0.0
    %1421 = vmatpush2.msra.mxu0 0.0
    %1422 = vmatprep.subr.mxu0 0.0
    %1423 = vmatpush2.msra.mxu0 0.0
    %1424 = vmatprep.subr.mxu0 0.0
    %1425 = vmatpush2.msra.mxu0 0.0
    %1426 = vmatprep.subr.mxu0 0.0
    %1427 = vmatpush2.msra.mxu0 0.0
    %1428 = vmatprep.subr.mxu0 0.0
    %1429 = vmatpush2.msra.mxu0 0.0
    %1430 = vmatprep.subr.mxu0 0.0
    %1431 = vmatpush2.msra.mxu0 0.0
    %1432 = vmatprep.subr.mxu0 0.0
    %1433 = vmatpush2.msra.mxu0 0.0
    %1434 = vmatprep.subr.mxu0 0.0
    %1435 = vmatpush2.msra.mxu0 0.0
    %1436 = vmatprep.subr.mxu0 0.0
    %1437 = vmatpush2.msra.mxu0 0.0
    %1438 = vmatprep.subr.mxu0 0.0
    %1439 = vmatpush2.msra.mxu0 0.0
    %1440 = vmatprep.mubr.f32.mxu0 0.0
    %1441 = vmatmul.mubr.f32.gmra.mxu0 %v1298
    %v1442 = vpop.f32.mrf.mxu0
    %v1443 = vadd.f32 0.0, %v1442
    %v1444 = vpop.f32.mrf.mxu0
    %1445 = vdwg.mxu0
    %v1446 = vadd.f32 %v1302, %v1372
    %v1447 = vxor.u32 %v1446, 2147483648
    %v1448 = vmul.f32 %v1447, 1.442695
    %v1449 = vpow.pop %v1448
    %v1450 = vadd.f32 %v1449, 1.0
    %v1451 = vrcp.pop %v1450
    %v1452 = vmul.f32 1.0, %v1451
    %v1453 = vadd.f32 %v1303, %v1374
    %v1454 = vxor.u32 %v1453, 2147483648
    %v1455 = vmul.f32 %v1454, 1.442695
    %v1456 = vpow.pop %v1455
    %v1457 = vadd.f32 %v1456, 1.0
    %v1458 = vrcp.pop %v1457
    %v1459 = vmul.f32 1.0, %v1458
    %v1460 = vadd.f32 %v1443, %v409
    %v1461 = vmul.f32 %v1452, %v1460
    %v1462 = vadd.f32 %v1304, %v1461
    %v1463 = vtanh.pop %v1462
    %v1464 = vsub.f32 %v1298, %v1463
    %v1465 = vmul.f32 %v1459, %v1464
    %v1466 = vadd.f32 %v1463, %v1465
    %s1467 = smul.u32 6, 3
    %s1468 = smul.addr %s1467, 8
    %s1469 = scalar_lea.vmem [#allocation2], %s1468
    %v1470 = vld [vmem:[%s1469] sm:$0xff]
    %v1471 = vld [vmem:[%s1469 + $0x8] sm:$0xff]
    %v1472 = vld [vmem:[%s1469 + $0x10] sm:$0xff]
    %1473 = vmatprep.subr.mxu0 %v463
    %1474 = vmatpush1.msra.mxu0 %v462
    %1475 = vmatprep.subr.mxu0 %v460
    %1476 = vmatpush1.msra.mxu0 %v459
    %1477 = vmatprep.subr.mxu0 %v457
    %1478 = vmatpush1.msra.mxu0 %v456
    %1479 = vmatprep.subr.mxu0 %v454
    %1480 = vmatpush1.msra.mxu0 %v453
    %1481 = vmatprep.subr.mxu0 %v451
    %1482 = vmatpush1.msra.mxu0 %v450
    %1483 = vmatprep.subr.mxu0 %v448
    %1484 = vmatpush1.msra.mxu0 %v447
    %1485 = vmatprep.subr.mxu0 %v445
    %1486 = vmatpush1.msra.mxu0 %v444
    %1487 = vmatprep.subr.mxu0 %v442
    %1488 = vmatpush1.msra.mxu0 %v441
    %1489 = vmatprep.subr.mxu0 %v439
    %1490 = vmatpush1.msra.mxu0 %v438
    %1491 = vmatprep.subr.mxu0 %v436
    %1492 = vmatpush1.msra.mxu0 %v435
    %1493 = vmatprep.subr.mxu0 %v433
    %1494 = vmatpush1.msra.mxu0 %v432
    %1495 = vmatprep.subr.mxu0 %v430
    %1496 = vmatpush1.msra.mxu0 %v429
    %1497 = vmatprep.subr.mxu0 %v427
    %1498 = vmatpush1.msra.mxu0 %v426
    %1499 = vmatprep.subr.mxu0 %v424
    %1500 = vmatpush1.msra.mxu0 %v423
    %1501 = vmatprep.subr.mxu0 %v421
    %1502 = vmatpush1.msra.mxu0 %v420
    %1503 = vmatprep.subr.mxu0 %v418
    %1504 = vmatpush1.msra.mxu0 %v417
    %1505 = vmatprep.subr.mxu0 0.0
    %1506 = vmatpush2.msra.mxu0 0.0
    %1507 = vmatprep.subr.mxu0 0.0
    %1508 = vmatpush2.msra.mxu0 0.0
    %1509 = vmatprep.subr.mxu0 0.0
    %1510 = vmatpush2.msra.mxu0 0.0
    %1511 = vmatprep.subr.mxu0 0.0
    %1512 = vmatpush2.msra.mxu0 0.0
    %1513 = vmatprep.subr.mxu0 0.0
    %1514 = vmatpush2.msra.mxu0 0.0
    %1515 = vmatprep.subr.mxu0 0.0
    %1516 = vmatpush2.msra.mxu0 0.0
    %1517 = vmatprep.subr.mxu0 0.0
    %1518 = vmatpush2.msra.mxu0 0.0
    %1519 = vmatprep.subr.mxu0 0.0
    %1520 = vmatpush2.msra.mxu0 0.0
    %1521 = vmatprep.subr.mxu0 0.0
    %1522 = vmatpush2.msra.mxu0 0.0
    %1523 = vmatprep.subr.mxu0 0.0
    %1524 = vmatpush2.msra.mxu0 0.0
    %1525 = vmatprep.subr.mxu0 0.0
    %1526 = vmatpush2.msra.mxu0 0.0
    %1527 = vmatprep.subr.mxu0 0.0
    %1528 = vmatpush2.msra.mxu0 0.0
    %1529 = vmatprep.subr.mxu0 0.0
    %1530 = vmatpush2.msra.mxu0 0.0
    %1531 = vmatprep.subr.mxu0 0.0
    %1532 = vmatpush2.msra.mxu0 0.0
    %1533 = vmatprep.subr.mxu0 0.0
    %1534 = vmatpush2.msra.mxu0 0.0
    %1535 = vmatprep.subr.mxu0 0.0
    %1536 = vmatpush2.msra.mxu0 0.0
    %1537 = vmatprep.mubr.f32.mxu0 0.0
    %1538 = vmatmul.mubr.f32.gmra.mxu0 %v1466
    %v1539 = vpop.f32.mrf.mxu0
    %v1540 = vadd.f32 0.0, %v1539
    %v1541 = vpop.f32.mrf.mxu0
    %v1542 = vadd.f32 0.0, %v1541
    %1543 = vdwg.mxu0
    %1544 = vmatprep.subr.mxu0 0.0
    %1545 = vmatpush1.msra.mxu0 %v464
    %1546 = vmatprep.subr.mxu0 0.0
    %1547 = vmatpush1.msra.mxu0 %v461
    %1548 = vmatprep.subr.mxu0 0.0
    %1549 = vmatpush1.msra.mxu0 %v458
    %1550 = vmatprep.subr.mxu0 0.0
    %1551 = vmatpush1.msra.mxu0 %v455
    %1552 = vmatprep.subr.mxu0 0.0
    %1553 = vmatpush1.msra.mxu0 %v452
    %1554 = vmatprep.subr.mxu0 0.0
    %1555 = vmatpush1.msra.mxu0 %v449
    %1556 = vmatprep.subr.mxu0 0.0
    %1557 = vmatpush1.msra.mxu0 %v446
    %1558 = vmatprep.subr.mxu0 0.0
    %1559 = vmatpush1.msra.mxu0 %v443
    %1560 = vmatprep.subr.mxu0 0.0
    %1561 = vmatpush1.msra.mxu0 %v440
    %1562 = vmatprep.subr.mxu0 0.0
    %1563 = vmatpush1.msra.mxu0 %v437
    %1564 = vmatprep.subr.mxu0 0.0
    %1565 = vmatpush1.msra.mxu0 %v434
    %1566 = vmatprep.subr.mxu0 0.0
    %1567 = vmatpush1.msra.mxu0 %v431
    %1568 = vmatprep.subr.mxu0 0.0
    %1569 = vmatpush1.msra.mxu0 %v428
    %1570 = vmatprep.subr.mxu0 0.0
    %1571 = vmatpush1.msra.mxu0 %v425
    %1572 = vmatprep.subr.mxu0 0.0
    %1573 = vmatpush1.msra.mxu0 %v422
    %1574 = vmatprep.subr.mxu0 0.0
    %1575 = vmatpush1.msra.mxu0 %v419
    %1576 = vmatprep.subr.mxu0 0.0
    %1577 = vmatpush2.msra.mxu0 0.0
    %1578 = vmatprep.subr.mxu0 0.0
    %1579 = vmatpush2.msra.mxu0 0.0
    %1580 = vmatprep.subr.mxu0 0.0
    %1581 = vmatpush2.msra.mxu0 0.0
    %1582 = vmatprep.subr.mxu0 0.0
    %1583 = vmatpush2.msra.mxu0 0.0
    %1584 = vmatprep.subr.mxu0 0.0
    %1585 = vmatpush2.msra.mxu0 0.0
    %1586 = vmatprep.subr.mxu0 0.0
    %1587 = vmatpush2.msra.mxu0 0.0
    %1588 = vmatprep.subr.mxu0 0.0
    %1589 = vmatpush2.msra.mxu0 0.0
    %1590 = vmatprep.subr.mxu0 0.0
    %1591 = vmatpush2.msra.mxu0 0.0
    %1592 = vmatprep.subr.mxu0 0.0
    %1593 = vmatpush2.msra.mxu0 0.0
    %1594 = vmatprep.subr.mxu0 0.0
    %1595 = vmatpush2.msra.mxu0 0.0
    %1596 = vmatprep.subr.mxu0 0.0
    %1597 = vmatpush2.msra.mxu0 0.0
    %1598 = vmatprep.subr.mxu0 0.0
    %1599 = vmatpush2.msra.mxu0 0.0
    %1600 = vmatprep.subr.mxu0 0.0
    %1601 = vmatpush2.msra.mxu0 0.0
    %1602 = vmatprep.subr.mxu0 0.0
    %1603 = vmatpush2.msra.mxu0 0.0
    %1604 = vmatprep.subr.mxu0 0.0
    %1605 = vmatpush2.msra.mxu0 0.0
    %1606 = vmatprep.subr.mxu0 0.0
    %1607 = vmatpush2.msra.mxu0 0.0
    %1608 = vmatprep.mubr.f32.mxu0 0.0
    %1609 = vmatmul.mubr.f32.gmra.mxu0 %v1466
    %v1610 = vpop.f32.mrf.mxu0
    %v1611 = vadd.f32 0.0, %v1610
    %v1612 = vpop.f32.mrf.mxu0
    %1613 = vdwg.mxu0
    %v1614 = vadd.f32 %v1470, %v1540
    %v1615 = vxor.u32 %v1614, 2147483648
    %v1616 = vmul.f32 %v1615, 1.442695
    %v1617 = vpow.pop %v1616
    %v1618 = vadd.f32 %v1617, 1.0
    %v1619 = vrcp.pop %v1618
    %v1620 = vmul.f32 1.0, %v1619
    %v1621 = vadd.f32 %v1471, %v1542
    %v1622 = vxor.u32 %v1621, 2147483648
    %v1623 = vmul.f32 %v1622, 1.442695
    %v1624 = vpow.pop %v1623
    %v1625 = vadd.f32 %v1624, 1.0
    %v1626 = vrcp.pop %v1625
    %v1627 = vmul.f32 1.0, %v1626
    %v1628 = vadd.f32 %v1611, %v409
    %v1629 = vmul.f32 %v1620, %v1628
    %v1630 = vadd.f32 %v1472, %v1629
    %v1631 = vtanh.pop %v1630
    %v1632 = vsub.f32 %v1466, %v1631
    %v1633 = vmul.f32 %v1627, %v1632
    %v1634 = vadd.f32 %v1631, %v1633
    %s1635 = smul.u32 7, 3
    %s1636 = smul.addr %s1635, 8
    %s1637 = scalar_lea.vmem [#allocation2], %s1636
    %v1638 = vld [vmem:[%s1637] sm:$0xff]
    %v1639 = vld [vmem:[%s1637 + $0x8] sm:$0xff]
    %v1640 = vld [vmem:[%s1637 + $0x10] sm:$0xff]
    %1641 = vmatprep.subr.mxu0 %v463
    %1642 = vmatpush1.msra.mxu0 %v462
    %1643 = vmatprep.subr.mxu0 %v460
    %1644 = vmatpush1.msra.mxu0 %v459
    %1645 = vmatprep.subr.mxu0 %v457
    %1646 = vmatpush1.msra.mxu0 %v456
    %1647 = vmatprep.subr.mxu0 %v454
    %1648 = vmatpush1.msra.mxu0 %v453
    %1649 = vmatprep.subr.mxu0 %v451
    %1650 = vmatpush1.msra.mxu0 %v450
    %1651 = vmatprep.subr.mxu0 %v448
    %1652 = vmatpush1.msra.mxu0 %v447
    %1653 = vmatprep.subr.mxu0 %v445
    %1654 = vmatpush1.msra.mxu0 %v444
    %1655 = vmatprep.subr.mxu0 %v442
    %1656 = vmatpush1.msra.mxu0 %v441
    %1657 = vmatprep.subr.mxu0 %v439
    %1658 = vmatpush1.msra.mxu0 %v438
    %1659 = vmatprep.subr.mxu0 %v436
    %1660 = vmatpush1.msra.mxu0 %v435
    %1661 = vmatprep.subr.mxu0 %v433
    %1662 = vmatpush1.msra.mxu0 %v432
    %1663 = vmatprep.subr.mxu0 %v430
    %1664 = vmatpush1.msra.mxu0 %v429
    %1665 = vmatprep.subr.mxu0 %v427
    %1666 = vmatpush1.msra.mxu0 %v426
    %1667 = vmatprep.subr.mxu0 %v424
    %1668 = vmatpush1.msra.mxu0 %v423
    %1669 = vmatprep.subr.mxu0 %v421
    %1670 = vmatpush1.msra.mxu0 %v420
    %1671 = vmatprep.subr.mxu0 %v418
    %1672 = vmatpush1.msra.mxu0 %v417
    %1673 = vmatprep.subr.mxu0 0.0
    %1674 = vmatpush2.msra.mxu0 0.0
    %1675 = vmatprep.subr.mxu0 0.0
    %1676 = vmatpush2.msra.mxu0 0.0
    %1677 = vmatprep.subr.mxu0 0.0
    %1678 = vmatpush2.msra.mxu0 0.0
    %1679 = vmatprep.subr.mxu0 0.0
    %1680 = vmatpush2.msra.mxu0 0.0
    %1681 = vmatprep.subr.mxu0 0.0
    %1682 = vmatpush2.msra.mxu0 0.0
    %1683 = vmatprep.subr.mxu0 0.0
    %1684 = vmatpush2.msra.mxu0 0.0
    %1685 = vmatprep.subr.mxu0 0.0
    %1686 = vmatpush2.msra.mxu0 0.0
    %1687 = vmatprep.subr.mxu0 0.0
    %1688 = vmatpush2.msra.mxu0 0.0
    %1689 = vmatprep.subr.mxu0 0.0
    %1690 = vmatpush2.msra.mxu0 0.0
    %1691 = vmatprep.subr.mxu0 0.0
    %1692 = vmatpush2.msra.mxu0 0.0
    %1693 = vmatprep.subr.mxu0 0.0
    %1694 = vmatpush2.msra.mxu0 0.0
    %1695 = vmatprep.subr.mxu0 0.0
    %1696 = vmatpush2.msra.mxu0 0.0
    %1697 = vmatprep.subr.mxu0 0.0
    %1698 = vmatpush2.msra.mxu0 0.0
    %1699 = vmatprep.subr.mxu0 0.0
    %1700 = vmatpush2.msra.mxu0 0.0
    %1701 = vmatprep.subr.mxu0 0.0
    %1702 = vmatpush2.msra.mxu0 0.0
    %1703 = vmatprep.subr.mxu0 0.0
    %1704 = vmatpush2.msra.mxu0 0.0
    %1705 = vmatprep.mubr.f32.mxu0 0.0
    %1706 = vmatmul.mubr.f32.gmra.mxu0 %v1634
    %v1707 = vpop.f32.mrf.mxu0
    %v1708 = vadd.f32 0.0, %v1707
    %v1709 = vpop.f32.mrf.mxu0
    %v1710 = vadd.f32 0.0, %v1709
    %1711 = vdwg.mxu0
    %1712 = vmatprep.subr.mxu0 0.0
    %1713 = vmatpush1.msra.mxu0 %v464
    %1714 = vmatprep.subr.mxu0 0.0
    %1715 = vmatpush1.msra.mxu0 %v461
    %1716 = vmatprep.subr.mxu0 0.0
    %1717 = vmatpush1.msra.mxu0 %v458
    %1718 = vmatprep.subr.mxu0 0.0
    %1719 = vmatpush1.msra.mxu0 %v455
    %1720 = vmatprep.subr.mxu0 0.0
    %1721 = vmatpush1.msra.mxu0 %v452
    %1722 = vmatprep.subr.mxu0 0.0
    %1723 = vmatpush1.msra.mxu0 %v449
    %1724 = vmatprep.subr.mxu0 0.0
    %1725 = vmatpush1.msra.mxu0 %v446
    %1726 = vmatprep.subr.mxu0 0.0
    %1727 = vmatpush1.msra.mxu0 %v443
    %1728 = vmatprep.subr.mxu0 0.0
    %1729 = vmatpush1.msra.mxu0 %v440
    %1730 = vmatprep.subr.mxu0 0.0
    %1731 = vmatpush1.msra.mxu0 %v437
    %1732 = vmatprep.subr.mxu0 0.0
    %1733 = vmatpush1.msra.mxu0 %v434
    %1734 = vmatprep.subr.mxu0 0.0
    %1735 = vmatpush1.msra.mxu0 %v431
    %1736 = vmatprep.subr.mxu0 0.0
    %1737 = vmatpush1.msra.mxu0 %v428
    %1738 = vmatprep.subr.mxu0 0.0
    %1739 = vmatpush1.msra.mxu0 %v425
    %1740 = vmatprep.subr.mxu0 0.0
    %1741 = vmatpush1.msra.mxu0 %v422
    %1742 = vmatprep.subr.mxu0 0.0
    %1743 = vmatpush1.msra.mxu0 %v419
    %1744 = vmatprep.subr.mxu0 0.0
    %1745 = vmatpush2.msra.mxu0 0.0
    %1746 = vmatprep.subr.mxu0 0.0
    %1747 = vmatpush2.msra.mxu0 0.0
    %1748 = vmatprep.subr.mxu0 0.0
    %1749 = vmatpush2.msra.mxu0 0.0
    %1750 = vmatprep.subr.mxu0 0.0
    %1751 = vmatpush2.msra.mxu0 0.0
    %1752 = vmatprep.subr.mxu0 0.0
    %1753 = vmatpush2.msra.mxu0 0.0
    %1754 = vmatprep.subr.mxu0 0.0
    %1755 = vmatpush2.msra.mxu0 0.0
    %1756 = vmatprep.subr.mxu0 0.0
    %1757 = vmatpush2.msra.mxu0 0.0
    %1758 = vmatprep.subr.mxu0 0.0
    %1759 = vmatpush2.msra.mxu0 0.0
    %1760 = vmatprep.subr.mxu0 0.0
    %1761 = vmatpush2.msra.mxu0 0.0
    %1762 = vmatprep.subr.mxu0 0.0
    %1763 = vmatpush2.msra.mxu0 0.0
    %1764 = vmatprep.subr.mxu0 0.0
    %1765 = vmatpush2.msra.mxu0 0.0
    %1766 = vmatprep.subr.mxu0 0.0
    %1767 = vmatpush2.msra.mxu0 0.0
    %1768 = vmatprep.subr.mxu0 0.0
    %1769 = vmatpush2.msra.mxu0 0.0
    %1770 = vmatprep.subr.mxu0 0.0
    %1771 = vmatpush2.msra.mxu0 0.0
    %1772 = vmatprep.subr.mxu0 0.0
    %1773 = vmatpush2.msra.mxu0 0.0
    %1774 = vmatprep.subr.mxu0 0.0
    %1775 = vmatpush2.msra.mxu0 0.0
    %1776 = vmatprep.mubr.f32.mxu0 0.0
    %1777 = vmatmul.mubr.f32.gmra.mxu0 %v1634
    %v1778 = vpop.f32.mrf.mxu0
    %v1779 = vadd.f32 0.0, %v1778
    %v1780 = vpop.f32.mrf.mxu0
    %1781 = vdwg.mxu0
    %v1782 = vadd.f32 %v1638, %v1708
    %v1783 = vxor.u32 %v1782, 2147483648
    %v1784 = vmul.f32 %v1783, 1.442695
    %v1785 = vpow.pop %v1784
    %v1786 = vadd.f32 %v1785, 1.0
    %v1787 = vrcp.pop %v1786
    %v1788 = vmul.f32 1.0, %v1787
    %v1789 = vadd.f32 %v1639, %v1710
    %v1790 = vxor.u32 %v1789, 2147483648
    %v1791 = vmul.f32 %v1790, 1.442695
    %v1792 = vpow.pop %v1791
    %v1793 = vadd.f32 %v1792, 1.0
    %v1794 = vrcp.pop %v1793
    %v1795 = vmul.f32 1.0, %v1794
    %v1796 = vadd.f32 %v1779, %v409
    %v1797 = vmul.f32 %v1788, %v1796
    %v1798 = vadd.f32 %v1640, %v1797
    %v1799 = vtanh.pop %v1798
    %v1800 = vsub.f32 %v1634, %v1799
    %v1801 = vmul.f32 %v1795, %v1800
    %v1802 = vadd.f32 %v1799, %v1801
    %v1803 = vld [vmem:[#allocation7] sm:$0xff]
    %v1804 = vld [vmem:[#allocation7 + $0x8] sm:$0xff]
    %v1805 = vld [vmem:[#allocation7 + $0x10] sm:$0xff]
    %v1806 = vld [vmem:[#allocation7 + $0x18] sm:$0xff]
    %v1807 = vld [vmem:[#allocation7 + $0x20] sm:$0xff]
    %v1808 = vld [vmem:[#allocation7 + $0x28] sm:$0xff]
    %v1809 = vld [vmem:[#allocation7 + $0x30] sm:$0xff]
    %v1810 = vld [vmem:[#allocation7 + $0x38] sm:$0xff]
    %v1811 = vld [vmem:[#allocation7 + $0x40] sm:$0xff]
    %v1812 = vld [vmem:[#allocation7 + $0x48] sm:$0xff]
    %v1813 = vld [vmem:[#allocation7 + $0x50] sm:$0xff]
    %v1814 = vld [vmem:[#allocation7 + $0x58] sm:$0xff]
    %v1815 = vld [vmem:[#allocation7 + $0x60] sm:$0xff]
    %v1816 = vld [vmem:[#allocation7 + $0x68] sm:$0xff]
    %v1817 = vld [vmem:[#allocation7 + $0x70] sm:$0xff]
    %v1818 = vld [vmem:[#allocation7 + $0x78] sm:$0xff]
    %v1819 = vld [vmem:[%s5] sm:$0x1]
    %v1821 = vlaneseq
    %v1822 = vshrl.u32 %v1821, 7
    %v1823 = vsub.s32 0, %v1822
    %v1824 = vrot.slane %v1819, %v1823
    %1826 = vmatprep.subr.mxu0 0.0
    %1827 = vmatpush1.msra.mxu0 %v1818
    %1828 = vmatprep.subr.mxu0 0.0
    %1829 = vmatpush1.msra.mxu0 %v1817
    %1830 = vmatprep.subr.mxu0 0.0
    %1831 = vmatpush1.msra.mxu0 %v1816
    %1832 = vmatprep.subr.mxu0 0.0
    %1833 = vmatpush1.msra.mxu0 %v1815
    %1834 = vmatprep.subr.mxu0 0.0
    %1835 = vmatpush1.msra.mxu0 %v1814
    %1836 = vmatprep.subr.mxu0 0.0
    %1837 = vmatpush1.msra.mxu0 %v1813
    %1838 = vmatprep.subr.mxu0 0.0
    %1839 = vmatpush1.msra.mxu0 %v1812
    %1840 = vmatprep.subr.mxu0 0.0
    %1841 = vmatpush1.msra.mxu0 %v1811
    %1842 = vmatprep.subr.mxu0 0.0
    %1843 = vmatpush1.msra.mxu0 %v1810
    %1844 = vmatprep.subr.mxu0 0.0
    %1845 = vmatpush1.msra.mxu0 %v1809
    %1846 = vmatprep.subr.mxu0 0.0
    %1847 = vmatpush1.msra.mxu0 %v1808
    %1848 = vmatprep.subr.mxu0 0.0
    %1849 = vmatpush1.msra.mxu0 %v1807
    %1850 = vmatprep.subr.mxu0 0.0
    %1851 = vmatpush1.msra.mxu0 %v1806
    %1852 = vmatprep.subr.mxu0 0.0
    %1853 = vmatpush1.msra.mxu0 %v1805
    %1854 = vmatprep.subr.mxu0 0.0
    %1855 = vmatpush1.msra.mxu0 %v1804
    %1856 = vmatprep.subr.mxu0 0.0
    %1857 = vmatpush1.msra.mxu0 %v1803
    %1858 = vmatprep.subr.mxu0 0.0
    %1859 = vmatpush2.msra.mxu0 0.0
    %1860 = vmatprep.subr.mxu0 0.0
    %1861 = vmatpush2.msra.mxu0 0.0
    %1862 = vmatprep.subr.mxu0 0.0
    %1863 = vmatpush2.msra.mxu0 0.0
    %1864 = vmatprep.subr.mxu0 0.0
    %1865 = vmatpush2.msra.mxu0 0.0
    %1866 = vmatprep.subr.mxu0 0.0
    %1867 = vmatpush2.msra.mxu0 0.0
    %1868 = vmatprep.subr.mxu0 0.0
    %1869 = vmatpush2.msra.mxu0 0.0
    %1870 = vmatprep.subr.mxu0 0.0
    %1871 = vmatpush2.msra.mxu0 0.0
    %1872 = vmatprep.subr.mxu0 0.0
    %1873 = vmatpush2.msra.mxu0 0.0
    %1874 = vmatprep.subr.mxu0 0.0
    %1875 = vmatpush2.msra.mxu0 0.0
    %1876 = vmatprep.subr.mxu0 0.0
    %1877 = vmatpush2.msra.mxu0 0.0
    %1878 = vmatprep.subr.mxu0 0.0
    %1879 = vmatpush2.msra.mxu0 0.0
    %1880 = vmatprep.subr.mxu0 0.0
    %1881 = vmatpush2.msra.mxu0 0.0
    %1882 = vmatprep.subr.mxu0 0.0
    %1883 = vmatpush2.msra.mxu0 0.0
    %1884 = vmatprep.subr.mxu0 0.0
    %1885 = vmatpush2.msra.mxu0 0.0
    %1886 = vmatprep.subr.mxu0 0.0
    %1887 = vmatpush2.msra.mxu0 0.0
    %1888 = vmatprep.subr.mxu0 0.0
    %1889 = vmatpush2.msra.mxu0 0.0
    %1890 = vmatprep.mubr.f32.mxu0 0.0
    %1891 = vmatmul.mubr.f32.gmra.mxu0 %v1802
    %v1892 = vpop.f32.mrf.mxu0
    %v1893 = vadd.f32 %v1824, %v1892
    %v1894 = vpop.f32.mrf.mxu0
    %1895 = vdwg.mxu0
    %1896 = vst [vmem:[%s6] sm:$0xff] %v1893
    // Predicated region
    $region38: #{banned_word_classifier_forward.1} parent=1 // pred_check
      _
    $region39: #{banned_word_classifier_forward.1} parent=1 // pred_check_branch
      %1898 = sbr.rel (0) target = $region41
    $region40: #{banned_word_classifier_forward.1} parent=1 // pred_region
      _
    $region41: #{banned_word_classifier_forward.1} parent=1 // pred_fallthru
      _
    // Predicated region
    $region42: #{banned_word_classifier_forward.1} parent=1 // pred_check
      _
    $region43: #{banned_word_classifier_forward.1} parent=1 // pred_check_branch
      %1900 = sbr.rel (0) target = $region45
    $region44: #{banned_word_classifier_forward.1} parent=1 // pred_region
      _
    $region45: #{banned_word_classifier_forward.1} parent=1 // pred_fallthru
      _
    %1901 = vsyncpa [#allocation4], 1
    %1902 = vsyncpa [#allocation6], 1

</llo_original>
